<compile_context>
chip_gen: v7x
topology: tpu7x:2x2x1
jax: 0.10.0
libtpu: 0.0.40
codegen_flags: <defaults>
</compile_context>

<pallas_src>
import functools

import jax
import jax.numpy as jnp
from jax import lax
from jax.experimental import pallas as pl
from jax.experimental.pallas import tpu as pltpu

LEAKY_SLOPE = 0.01   # PyTorch nn.LeakyReLU default negative_slope
BN_EPS = 1e-5        # PyTorch nn.BatchNorm2d default eps


def _round_up(x, m):
    return (x + m - 1) // m * m


def _double_conv_kernel(x_ref, w1_ref, b1_ref, w2_ref, b2_ref, o_ref,
                        pbuf1, col1, pbuf2, col2, *,
                        H, W, K, pad, dil, PBa, cin, cin1p, cin2p, cout, bpg):
    """Fused (conv+BN+LeakyReLU) x 2 for `bpg` batch elements per grid step.

    x_ref : (bpg, cin, H*W)          flattened-spatial input tile
    wX_ref: (cout, K*K*cinXp)        BN-scale-folded weights, cols (kh,kw,ci)
    bX_ref: (cout, 1)                folded conv-bias + BN bias (f32)
    o_ref : (bpg, cout, H*W)
    pbufX : VMEM (bpg, cinXp, L)     L = 2*PBa + H*W, lane-aligned zero pads
    colX  : VMEM (K*K*cinXp, bpg*H*W) im2col matrices
    """
    HW = H * W
    PB = pad * (W + 1)               # minimal flat pad needed on each side

    # One-time zero fill: pad columns and the padded (unused) channel rows
    # must read as zero; the interiors are fully overwritten every step.
    # Valid because the grid axis is "arbitrary" (sequential), so step 0 runs
    # first on the single TensorCore owning these scratches.
    @pl.when(pl.program_id(0) == 0)
    def _init():
        pbuf1[...] = jnp.zeros_like(pbuf1)
        pbuf2[...] = jnp.zeros_like(pbuf2)

    # Column-validity masks, one per kw tap (W wraparound).  Row (H)
    # boundaries are handled by the zero pads of the flat buffers.
    flatpos = lax.broadcasted_iota(jnp.int32, (1, HW), 1)
    colpos = flatpos % W
    col_masks = []
    for kw in range(K):
        dw = kw * dil - pad
        col_masks.append(jnp.logical_and(colpos + dw >= 0, colpos + dw < W))

    def conv_stage(pbuf, colbuf, w_ref, b_ref, cin_p):
        # im2col rows ordered (kh, kw, ci_padded); columns ordered (b, h*w).
        # Each tap store is a full-sublane-group, 128-lane-aligned store.
        for kh in range(K):
            for kw in range(K):
                t = kh * K + kw
                start = PBa - PB + kh * dil * W + kw * dil
                dw = kw * dil - pad
                for b in range(bpg):
                    tap = pbuf[b, :, start:start + HW]
                    if dw != 0:                  # W-wraparound columns
                        tap = jnp.where(col_masks[kw], tap, 0)
                    colbuf[t * cin_p:(t + 1) * cin_p,
                           b * HW:(b + 1) * HW] = tap
        # One MXU matmul over all merged batch columns, f32 accumulation.
        y = jnp.dot(w_ref[...], colbuf[...],
                    preferred_element_type=jnp.float32)
        y = y + b_ref[...]                          # folded conv+BN bias
        return jnp.where(y > 0, y, LEAKY_SLOPE * y)  # LeakyReLU(0.01)

    # ---- stage 1: drop input into the padded flat buffer (cast in-kernel).
    for b in range(bpg):
        pbuf1[b, :cin, PBa:PBa + HW] = x_ref[b].astype(pbuf1.dtype)
    y1 = conv_stage(pbuf1, col1, w1_ref, b1_ref, cin1p)   # (cout, bpg*HW)

    # ---- stage 2: stage-1 activation never leaves VMEM.
    for b in range(bpg):
        pbuf2[b, :cout, PBa:PBa + HW] = (
            y1[:, b * HW:(b + 1) * HW].astype(pbuf2.dtype))
    y2 = conv_stage(pbuf2, col2, w2_ref, b2_ref, cin2p)

    for b in range(bpg):                        # lane-dense (cout, HW) stores
        o_ref[b] = y2[:, b * HW:(b + 1) * HW].astype(o_ref.dtype)


def _fold_stage(p, cin_pad, eps=BN_EPS, dtype=jnp.float32):
    """Fold inference BatchNorm into conv weights / bias, pad Cin columns.

    Returns w: (Cout, K*K*cin_pad), columns ordered (kh, kw, ci_padded) with
    zeros for the padded channels, and bias (Cout, 1) f32.
    """
    w = p["w_oihw"]                          # (cout, cin, K, K) PyTorch layout
    cout, cin, kh, kw = w.shape
    scale = p["gamma"] / jnp.sqrt(p["var"] + eps)
    w = w * scale[:, None, None, None]
    if cin_pad > cin:                        # zero cols for padded im2col rows
        w = jnp.pad(w, ((0, 0), (0, cin_pad - cin), (0, 0), (0, 0)))
    w = jnp.transpose(w, (0, 2, 3, 1)).reshape(cout, kh * kw * cin_pad)
    bias = (p["b"] - p["mean"]) * scale + p["beta"]
    return w.astype(dtype), bias.reshape(cout, 1).astype(jnp.float32)


def double_conv_block(x_nchw, params, *, pad, dil,
                      compute_dtype=jnp.float32, batch_per_step=None):
    """Forward pass matching PyTorch DoubleConvBlock.  Input/output NCHW.

    compute_dtype=jnp.bfloat16 halves VMEM scratch and doubles MXU rate on
    v6e/v7x (accumulation stays f32); note bf16 quantizes the stage-1
    activation, so loosen tolerances when comparing against an f32 reference.
    """
    N, Cin, H, W = x_nchw.shape
    Cout, _, K, _ = params["c1"]["w_oihw"].shape
    # The flat-spatial fused kernel assumes "same"-size convolutions, which is
    # how DoubleConvBlock is used (e.g. k=3, pad=1, dil=1).
    assert 2 * pad == dil * (K - 1), "kernel requires same-size convolutions"

    if batch_per_step is None:
        batch_per_step = N     # merge whole batch: widest matmul columns.
        # TODO(synk): on v7x (2 TCs) prefer N//2 per step on a "parallel" axis
        #             once the one-time pad init is made per-core safe.
    assert N % batch_per_step == 0
    bpg = batch_per_step

    HW = H * W
    PB = pad * (W + 1)
    PBa = _round_up(PB, 128) if PB else 0        # lane-aligned interior offset
    L = 2 * PBa + HW

    sub = (8 * 4) // jnp.dtype(compute_dtype).itemsize   # rows / sublane group
    cin1p = _round_up(Cin, sub)
    cin2p = _round_up(Cout, sub)

    w1, b1 = _fold_stage(params["c1"], cin1p, dtype=compute_dtype)
    w2, b2 = _fold_stage(params["c2"], cin2p, dtype=compute_dtype)
    x_flat = x_nchw.reshape(N, Cin, HW)          # free reshape, no astype pass

    kernel = functools.partial(
        _double_conv_kernel, H=H, W=W, K=K, pad=pad, dil=dil, PBa=PBa,
        cin=Cin, cin1p=cin1p, cin2p=cin2p, cout=Cout, bpg=bpg)

    itm = jnp.dtype(compute_dtype).itemsize
    scratch_bytes = (bpg * cin1p * L + K * K * cin1p * bpg * HW
                     + bpg * cin2p * L + K * K * cin2p * bpg * HW) * itm
    io_bytes = (bpg * Cin * HW * x_nchw.dtype.itemsize
                + bpg * Cout * HW * jnp.dtype(x_nchw.dtype).itemsize
                + (w1.size + w2.size) * itm + (b1.size + b2.size) * 4)
    vmem_limit = int(min(100 << 20,
                         max(32 << 20, 2 * (scratch_bytes + 2 * io_bytes))))

    out_flat = pl.pallas_call(
        kernel,
        out_shape=jax.ShapeDtypeStruct((N, Cout, HW), x_nchw.dtype),
        grid_spec=pltpu.PrefetchScalarGridSpec(
            num_scalar_prefetch=0,
            grid=(N // bpg,),
            in_specs=[
                pl.BlockSpec((bpg, Cin, HW), lambda n: (n, 0, 0)),
                pl.BlockSpec((Cout, K * K * cin1p), lambda n: (0, 0)),
                pl.BlockSpec((Cout, 1), lambda n: (0, 0)),
                pl.BlockSpec((Cout, K * K * cin2p), lambda n: (0, 0)),
                pl.BlockSpec((Cout, 1), lambda n: (0, 0)),
            ],
            out_specs=pl.BlockSpec((bpg, Cout, HW), lambda n: (n, 0, 0)),
            scratch_shapes=[
                pltpu.VMEM((bpg, cin1p, L), compute_dtype),           # pbuf1
                pltpu.VMEM((K * K * cin1p, bpg * HW), compute_dtype),  # col1
                pltpu.VMEM((bpg, cin2p, L), compute_dtype),           # pbuf2
                pltpu.VMEM((K * K * cin2p, bpg * HW), compute_dtype),  # col2
            ],
        ),
        compiler_params=pltpu.CompilerParams(
            # "arbitrary": the one-time pad zero-init (program_id(0)==0)
            # relies on the grid running sequentially on one TensorCore.
            dimension_semantics=("arbitrary",),
            vmem_limit_bytes=vmem_limit,
        ),
    )(x_flat, w1, b1, w2, b2)
    return out_flat.reshape(N, Cout, H, W)


def _reference_nchw(x, params, *, pad, dil):
    """Pure-JAX reference (lax.conv, NCHW end-to-end) for correctness check."""
    for stage in ("c1", "c2"):
        p = params[stage]
        y = lax.conv_general_dilated(
            x, p["w_oihw"],
            window_strides=(1, 1),
            padding=[(pad, pad), (pad, pad)],
            rhs_dilation=(dil, dil),
            dimension_numbers=("NCHW", "OIHW", "NCHW"))
        y = y + p["b"][None, :, None, None]
        y = ((y - p["mean"][None, :, None, None])
             / jnp.sqrt(p["var"] + BN_EPS)[None, :, None, None]
             * p["gamma"][None, :, None, None]
             + p["beta"][None, :, None, None])
        x = jnp.where(y > 0, y, LEAKY_SLOPE * y)
    return x


def make_params(key, in_ch, out_ch, k_size):
    """Deterministic synthetic parameters (PyTorch Conv2d weight is OIHW)."""
    ks = jax.random.split(key, 12)

    def stage(kw, kb, kg, kbt, km, kv, cin):
        return dict(
            w_oihw=0.1 * jax.random.normal(kw, (out_ch, cin, k_size, k_size),
                                           jnp.float32),
            b=0.1 * jax.random.normal(kb, (out_ch,), jnp.float32),
            gamma=1.0 + 0.1 * jax.random.normal(kg, (out_ch,), jnp.float32),
            beta=0.1 * jax.random.normal(kbt, (out_ch,), jnp.float32),
            mean=0.1 * jax.random.normal(km, (out_ch,), jnp.float32),
            var=jnp.abs(1.0 + 0.1 * jax.random.normal(kv, (out_ch,),
                                                      jnp.float32)),
        )

    return {"c1": stage(*ks[0:6], in_ch), "c2": stage(*ks[6:12], out_ch)}


if __name__ == "__main__":
    # Shapes consistent with DoubleConvBlock(in_ch=4, out_ch=8, k=3, pad=1, dil=1)
    N, IN_CH, OUT_CH, H, W = 2, 4, 8, 16, 16
    K, PAD, DIL = 3, 1, 1

    key = jax.random.PRNGKey(0)
    kx, kp = jax.random.split(key)
    x = jax.random.normal(kx, (N, IN_CH, H, W), jnp.float32)   # NCHW input
    params = make_params(kp, IN_CH, OUT_CH, K)

    out = double_conv_block(x, params, pad=PAD, dil=DIL)
    out = jax.block_until_ready(out)

    ref = _reference_nchw(x, params, pad=PAD, dil=DIL)
    assert out.shape == (N, OUT_CH, H, W), out.shape
    assert jnp.allclose(out, ref, atol=1e-4, rtol=1e-4), \
        float(jnp.max(jnp.abs(out - ref)))

    print("KERNEL_OK")
</pallas_src>

<mosaic_0001>
module attributes {stable_mosaic.version = 11 : i64} {
  func.func @_double_conv_kernel(%arg0: i32, %arg1: memref<2x4x256xf32, #tpu.memory_space<vmem>>, %arg2: memref<8x72xf32, #tpu.memory_space<vmem>>, %arg3: memref<8x1xf32, #tpu.memory_space<vmem>>, %arg4: memref<8x72xf32, #tpu.memory_space<vmem>>, %arg5: memref<8x1xf32, #tpu.memory_space<vmem>>, %arg6: memref<2x8x256xf32, #tpu.memory_space<vmem>>, %arg7: memref<2x8x512xf32, #tpu.memory_space<vmem>>, %arg8: memref<72x512xf32, #tpu.memory_space<vmem>>, %arg9: memref<2x8x512xf32, #tpu.memory_space<vmem>>, %arg10: memref<72x512xf32, #tpu.memory_space<vmem>>) attributes {dimension_semantics = [#tpu.dimension_semantics<arbitrary>], iteration_bounds = array<i64: 1>, scalar_prefetch = 0 : i64, scratch_operands = 4 : i64, tpu.core_type = #tpu.core_type<tc>, window_params = [{transform_indices = @transform_0, window_bounds = array<i64: 2, 4, 256>}, {pipeline_mode = #tpu.pipeline_mode<synchronous>, transform_indices = @transform_1, window_bounds = array<i64: 8, 72>}, {pipeline_mode = #tpu.pipeline_mode<synchronous>, transform_indices = @transform_2, window_bounds = array<i64: 8, 1>}, {pipeline_mode = #tpu.pipeline_mode<synchronous>, transform_indices = @transform_3, window_bounds = array<i64: 8, 72>}, {pipeline_mode = #tpu.pipeline_mode<synchronous>, transform_indices = @transform_4, window_bounds = array<i64: 8, 1>}, {transform_indices = @transform_5, window_bounds = array<i64: 2, 8, 256>}]} {
    %c0_i32 = arith.constant 0 : i32
    %0 = arith.cmpi eq, %arg0, %c0_i32 : i32
    %1 = arith.extui %0 : i1 to i32
    %c0_i32_0 = arith.constant 0 : i32
    %2 = arith.cmpi ne, %1, %c0_i32_0 : i32
    scf.if %2 {
      %cst_237 = arith.constant 0.000000e+00 : f32
      %314 = vector.broadcast %cst_237 : f32 to vector<2x8x512xf32>
      %c0_238 = arith.constant 0 : index
      %c0_239 = arith.constant 0 : index
      %c0_240 = arith.constant 0 : index
      %315 = vector.load %arg7[%c0_238, %c0_239, %c0_240] : memref<2x8x512xf32, #tpu.memory_space<vmem>>, vector<2x8x512xf32>
      tpu.vector_store %arg7[%c0_238, %c0_239, %c0_240], %314 {strides = array<i32>} : memref<2x8x512xf32, #tpu.memory_space<vmem>>, vector<2x8x512xf32>,
      %cst_241 = arith.constant 0.000000e+00 : f32
      %316 = vector.broadcast %cst_241 : f32 to vector<2x8x512xf32>
      %c0_242 = arith.constant 0 : index
      %c0_243 = arith.constant 0 : index
      %c0_244 = arith.constant 0 : index
      %317 = vector.load %arg9[%c0_242, %c0_243, %c0_244] : memref<2x8x512xf32, #tpu.memory_space<vmem>>, vector<2x8x512xf32>
      tpu.vector_store %arg9[%c0_242, %c0_243, %c0_244], %316 {strides = array<i32>} : memref<2x8x512xf32, #tpu.memory_space<vmem>>, vector<2x8x512xf32>,
    } else {
    }
    %3 = tpu.iota {dimensions = array<i32: 1>} : vector<1x256xi32>
    %c16_i32 = arith.constant 16 : i32
    %c0_i32_1 = arith.constant 0 : i32
    %4 = arith.cmpi eq, %c16_i32, %c0_i32_1 : i32
    %c1_i32 = arith.constant 1 : i32
    %5 = arith.select %4, %c1_i32, %c16_i32 : i32
    %6 = vector.broadcast %5 : i32 to vector<1x256xi32>
    %7 = arith.remsi %3, %6 : vector<1x256xi32>
    %c0_i32_2 = arith.constant 0 : i32
    %8 = vector.broadcast %c0_i32_2 : i32 to vector<1x256xi32>
    %9 = arith.cmpi ne, %7, %8 : vector<1x256xi32>
    %c0_i32_3 = arith.constant 0 : i32
    %10 = vector.broadcast %c0_i32_3 : i32 to vector<1x256xi32>
    %11 = arith.cmpi slt, %7, %10 : vector<1x256xi32>
    %c0_i32_4 = arith.constant 0 : i32
    %12 = arith.cmpi slt, %5, %c0_i32_4 : i32
    %13 = vector.broadcast %12 : i1 to vector<1x256xi1>
    %14 = vector.broadcast %13 : vector<1x256xi1> to vector<1x256xi1>
    %15 = arith.xori %11, %14 : vector<1x256xi1>
    %16 = arith.andi %15, %9 : vector<1x256xi1>
    %17 = vector.broadcast %5 : i32 to vector<1x256xi32>
    %18 = arith.addi %7, %17 : vector<1x256xi32>
    %19 = arith.select %16, %18, %7 : vector<1x256xi1>, vector<1x256xi32>
    %c-1_i32 = arith.constant -1 : i32
    %20 = vector.broadcast %c-1_i32 : i32 to vector<1x256xi32>
    %21 = arith.addi %19, %20 : vector<1x256xi32>
    %c0_i32_5 = arith.constant 0 : i32
    %22 = vector.broadcast %c0_i32_5 : i32 to vector<1x256xi32>
    %23 = arith.cmpi sge, %21, %22 : vector<1x256xi32>
    %c-1_i32_6 = arith.constant -1 : i32
    %24 = vector.broadcast %c-1_i32_6 : i32 to vector<1x256xi32>
    %25 = arith.addi %19, %24 : vector<1x256xi32>
    %c16_i32_7 = arith.constant 16 : i32
    %26 = vector.broadcast %c16_i32_7 : i32 to vector<1x256xi32>
    %27 = arith.cmpi slt, %25, %26 : vector<1x256xi32>
    %28 = arith.andi %23, %27 : vector<1x256xi1>
    %c1_i32_8 = arith.constant 1 : i32
    %29 = vector.broadcast %c1_i32_8 : i32 to vector<1x256xi32>
    %30 = arith.addi %19, %29 : vector<1x256xi32>
    %c0_i32_9 = arith.constant 0 : i32
    %31 = vector.broadcast %c0_i32_9 : i32 to vector<1x256xi32>
    %32 = arith.cmpi sge, %30, %31 : vector<1x256xi32>
    %c1_i32_10 = arith.constant 1 : i32
    %33 = vector.broadcast %c1_i32_10 : i32 to vector<1x256xi32>
    %34 = arith.addi %19, %33 : vector<1x256xi32>
    %c16_i32_11 = arith.constant 16 : i32
    %35 = vector.broadcast %c16_i32_11 : i32 to vector<1x256xi32>
    %36 = arith.cmpi slt, %34, %35 : vector<1x256xi32>
    %37 = arith.andi %32, %36 : vector<1x256xi1>
    %c0 = arith.constant 0 : index
    %c0_12 = arith.constant 0 : index
    %c0_13 = arith.constant 0 : index
    %38 = vector.load %arg1[%c0, %c0_12, %c0_13] : memref<2x4x256xf32, #tpu.memory_space<vmem>>, vector<1x4x256xf32>
    %39 = vector.shape_cast %38 : vector<1x4x256xf32> to vector<4x256xf32>
    %c0_14 = arith.constant 0 : index
    %c0_15 = arith.constant 0 : index
    %c128 = arith.constant 128 : index
    %40 = vector.load %arg7[%c0_14, %c0_15, %c128] : memref<2x8x512xf32, #tpu.memory_space<vmem>>, vector<1x4x256xf32>
    %41 = vector.shape_cast %40 : vector<1x4x256xf32> to vector<4x256xf32>
    %42 = vector.shape_cast %39 : vector<4x256xf32> to vector<1x4x256xf32>
    tpu.vector_store %arg7[%c0_14, %c0_15, %c128], %42 {strides = array<i32>} : memref<2x8x512xf32, #tpu.memory_space<vmem>>, vector<1x4x256xf32>,
    %c1 = arith.constant 1 : index
    %c0_16 = arith.constant 0 : index
    %c0_17 = arith.constant 0 : index
    %43 = vector.load %arg1[%c1, %c0_16, %c0_17] : memref<2x4x256xf32, #tpu.memory_space<vmem>>, vector<1x4x256xf32>
    %44 = vector.shape_cast %43 : vector<1x4x256xf32> to vector<4x256xf32>
    %c1_18 = arith.constant 1 : index
    %c0_19 = arith.constant 0 : index
    %c128_20 = arith.constant 128 : index
    %45 = vector.load %arg7[%c1_18, %c0_19, %c128_20] : memref<2x8x512xf32, #tpu.memory_space<vmem>>, vector<1x4x256xf32>
    %46 = vector.shape_cast %45 : vector<1x4x256xf32> to vector<4x256xf32>
    %47 = vector.shape_cast %44 : vector<4x256xf32> to vector<1x4x256xf32>
    tpu.vector_store %arg7[%c1_18, %c0_19, %c128_20], %47 {strides = array<i32>} : memref<2x8x512xf32, #tpu.memory_space<vmem>>, vector<1x4x256xf32>,
    %c0_21 = arith.constant 0 : index
    %c0_22 = arith.constant 0 : index
    %c111 = arith.constant 111 : index
    %48 = vector.load %arg7[%c0_21, %c0_22, %c111] : memref<2x8x512xf32, #tpu.memory_space<vmem>>, vector<1x8x256xf32>
    %49 = vector.shape_cast %48 : vector<1x8x256xf32> to vector<8x256xf32>
    %c0_i32_23 = arith.constant 0 : i32
    %50 = arith.sitofp %c0_i32_23 : i32 to f32
    %51 = vector.shape_cast %28 : vector<1x256xi1> to vector<1x256xi1>
    %52 = vector.broadcast %51 : vector<1x256xi1> to vector<8x256xi1>
    %53 = vector.broadcast %50 : f32 to vector<8x256xf32>
    %54 = arith.select %52, %49, %53 : vector<8x256xi1>, vector<8x256xf32>
    %c0_24 = arith.constant 0 : index
    %c0_25 = arith.constant 0 : index
    %55 = vector.load %arg8[%c0_24, %c0_25] : memref<72x512xf32, #tpu.memory_space<vmem>>, vector<8x256xf32>
    tpu.vector_store %arg8[%c0_24, %c0_25], %54 {strides = array<i32>} : memref<72x512xf32, #tpu.memory_space<vmem>>, vector<8x256xf32>,
    %c1_26 = arith.constant 1 : index
    %c0_27 = arith.constant 0 : index
    %c111_28 = arith.constant 111 : index
    %56 = vector.load %arg7[%c1_26, %c0_27, %c111_28] : memref<2x8x512xf32, #tpu.memory_space<vmem>>, vector<1x8x256xf32>
    %57 = vector.shape_cast %56 : vector<1x8x256xf32> to vector<8x256xf32>
    %c0_i32_29 = arith.constant 0 : i32
    %58 = arith.sitofp %c0_i32_29 : i32 to f32
    %59 = vector.shape_cast %28 : vector<1x256xi1> to vector<1x256xi1>
    %60 = vector.broadcast %59 : vector<1x256xi1> to vector<8x256xi1>
    %61 = vector.broadcast %58 : f32 to vector<8x256xf32>
    %62 = arith.select %60, %57, %61 : vector<8x256xi1>, vector<8x256xf32>
    %c0_30 = arith.constant 0 : index
    %c256 = arith.constant 256 : index
    %63 = vector.load %arg8[%c0_30, %c256] : memref<72x512xf32, #tpu.memory_space<vmem>>, vector<8x256xf32>
    tpu.vector_store %arg8[%c0_30, %c256], %62 {strides = array<i32>} : memref<72x512xf32, #tpu.memory_space<vmem>>, vector<8x256xf32>,
    %c0_31 = arith.constant 0 : index
    %c0_32 = arith.constant 0 : index
    %c112 = arith.constant 112 : index
    %64 = vector.load %arg7[%c0_31, %c0_32, %c112] : memref<2x8x512xf32, #tpu.memory_space<vmem>>, vector<1x8x256xf32>
    %65 = vector.shape_cast %64 : vector<1x8x256xf32> to vector<8x256xf32>
    %c8 = arith.constant 8 : index
    %c0_33 = arith.constant 0 : index
    %66 = vector.load %arg8[%c8, %c0_33] : memref<72x512xf32, #tpu.memory_space<vmem>>, vector<8x256xf32>
    tpu.vector_store %arg8[%c8, %c0_33], %65 {strides = array<i32>} : memref<72x512xf32, #tpu.memory_space<vmem>>, vector<8x256xf32>,
    %c1_34 = arith.constant 1 : index
    %c0_35 = arith.constant 0 : index
    %c112_36 = arith.constant 112 : index
    %67 = vector.load %arg7[%c1_34, %c0_35, %c112_36] : memref<2x8x512xf32, #tpu.memory_space<vmem>>, vector<1x8x256xf32>
    %68 = vector.shape_cast %67 : vector<1x8x256xf32> to vector<8x256xf32>
    %c8_37 = arith.constant 8 : index
    %c256_38 = arith.constant 256 : index
    %69 = vector.load %arg8[%c8_37, %c256_38] : memref<72x512xf32, #tpu.memory_space<vmem>>, vector<8x256xf32>
    tpu.vector_store %arg8[%c8_37, %c256_38], %68 {strides = array<i32>} : memref<72x512xf32, #tpu.memory_space<vmem>>, vector<8x256xf32>,
    %c0_39 = arith.constant 0 : index
    %c0_40 = arith.constant 0 : index
    %c113 = arith.constant 113 : index
    %70 = vector.load %arg7[%c0_39, %c0_40, %c113] : memref<2x8x512xf32, #tpu.memory_space<vmem>>, vector<1x8x256xf32>
    %71 = vector.shape_cast %70 : vector<1x8x256xf32> to vector<8x256xf32>
    %c0_i32_41 = arith.constant 0 : i32
    %72 = arith.sitofp %c0_i32_41 : i32 to f32
    %73 = vector.shape_cast %37 : vector<1x256xi1> to vector<1x256xi1>
    %74 = vector.broadcast %73 : vector<1x256xi1> to vector<8x256xi1>
    %75 = vector.broadcast %72 : f32 to vector<8x256xf32>
    %76 = arith.select %74, %71, %75 : vector<8x256xi1>, vector<8x256xf32>
    %c16 = arith.constant 16 : index
    %c0_42 = arith.constant 0 : index
    %77 = vector.load %arg8[%c16, %c0_42] : memref<72x512xf32, #tpu.memory_space<vmem>>, vector<8x256xf32>
    tpu.vector_store %arg8[%c16, %c0_42], %76 {strides = array<i32>} : memref<72x512xf32, #tpu.memory_space<vmem>>, vector<8x256xf32>,
    %c1_43 = arith.constant 1 : index
    %c0_44 = arith.constant 0 : index
    %c113_45 = arith.constant 113 : index
    %78 = vector.load %arg7[%c1_43, %c0_44, %c113_45] : memref<2x8x512xf32, #tpu.memory_space<vmem>>, vector<1x8x256xf32>
    %79 = vector.shape_cast %78 : vector<1x8x256xf32> to vector<8x256xf32>
    %c0_i32_46 = arith.constant 0 : i32
    %80 = arith.sitofp %c0_i32_46 : i32 to f32
    %81 = vector.shape_cast %37 : vector<1x256xi1> to vector<1x256xi1>
    %82 = vector.broadcast %81 : vector<1x256xi1> to vector<8x256xi1>
    %83 = vector.broadcast %80 : f32 to vector<8x256xf32>
    %84 = arith.select %82, %79, %83 : vector<8x256xi1>, vector<8x256xf32>
    %c16_47 = arith.constant 16 : index
    %c256_48 = arith.constant 256 : index
    %85 = vector.load %arg8[%c16_47, %c256_48] : memref<72x512xf32, #tpu.memory_space<vmem>>, vector<8x256xf32>
    tpu.vector_store %arg8[%c16_47, %c256_48], %84 {strides = array<i32>} : memref<72x512xf32, #tpu.memory_space<vmem>>, vector<8x256xf32>,
    %c0_49 = arith.constant 0 : index
    %c0_50 = arith.constant 0 : index
    %c127 = arith.constant 127 : index
    %86 = vector.load %arg7[%c0_49, %c0_50, %c127] : memref<2x8x512xf32, #tpu.memory_space<vmem>>, vector<1x8x256xf32>
    %87 = vector.shape_cast %86 : vector<1x8x256xf32> to vector<8x256xf32>
    %c0_i32_51 = arith.constant 0 : i32
    %88 = arith.sitofp %c0_i32_51 : i32 to f32
    %89 = vector.shape_cast %28 : vector<1x256xi1> to vector<1x256xi1>
    %90 = vector.broadcast %89 : vector<1x256xi1> to vector<8x256xi1>
    %91 = vector.broadcast %88 : f32 to vector<8x256xf32>
    %92 = arith.select %90, %87, %91 : vector<8x256xi1>, vector<8x256xf32>
    %c24 = arith.constant 24 : index
    %c0_52 = arith.constant 0 : index
    %93 = vector.load %arg8[%c24, %c0_52] : memref<72x512xf32, #tpu.memory_space<vmem>>, vector<8x256xf32>
    tpu.vector_store %arg8[%c24, %c0_52], %92 {strides = array<i32>} : memref<72x512xf32, #tpu.memory_space<vmem>>, vector<8x256xf32>,
    %c1_53 = arith.constant 1 : index
    %c0_54 = arith.constant 0 : index
    %c127_55 = arith.constant 127 : index
    %94 = vector.load %arg7[%c1_53, %c0_54, %c127_55] : memref<2x8x512xf32, #tpu.memory_space<vmem>>, vector<1x8x256xf32>
    %95 = vector.shape_cast %94 : vector<1x8x256xf32> to vector<8x256xf32>
    %c0_i32_56 = arith.constant 0 : i32
    %96 = arith.sitofp %c0_i32_56 : i32 to f32
    %97 = vector.shape_cast %28 : vector<1x256xi1> to vector<1x256xi1>
    %98 = vector.broadcast %97 : vector<1x256xi1> to vector<8x256xi1>
    %99 = vector.broadcast %96 : f32 to vector<8x256xf32>
    %100 = arith.select %98, %95, %99 : vector<8x256xi1>, vector<8x256xf32>
    %c24_57 = arith.constant 24 : index
    %c256_58 = arith.constant 256 : index
    %101 = vector.load %arg8[%c24_57, %c256_58] : memref<72x512xf32, #tpu.memory_space<vmem>>, vector<8x256xf32>
    tpu.vector_store %arg8[%c24_57, %c256_58], %100 {strides = array<i32>} : memref<72x512xf32, #tpu.memory_space<vmem>>, vector<8x256xf32>,
    %c0_59 = arith.constant 0 : index
    %c0_60 = arith.constant 0 : index
    %c128_61 = arith.constant 128 : index
    %102 = vector.load %arg7[%c0_59, %c0_60, %c128_61] : memref<2x8x512xf32, #tpu.memory_space<vmem>>, vector<1x8x256xf32>
    %103 = vector.shape_cast %102 : vector<1x8x256xf32> to vector<8x256xf32>
    %c32 = arith.constant 32 : index
    %c0_62 = arith.constant 0 : index
    %104 = vector.load %arg8[%c32, %c0_62] : memref<72x512xf32, #tpu.memory_space<vmem>>, vector<8x256xf32>
    tpu.vector_store %arg8[%c32, %c0_62], %103 {strides = array<i32>} : memref<72x512xf32, #tpu.memory_space<vmem>>, vector<8x256xf32>,
    %c1_63 = arith.constant 1 : index
    %c0_64 = arith.constant 0 : index
    %c128_65 = arith.constant 128 : index
    %105 = vector.load %arg7[%c1_63, %c0_64, %c128_65] : memref<2x8x512xf32, #tpu.memory_space<vmem>>, vector<1x8x256xf32>
    %106 = vector.shape_cast %105 : vector<1x8x256xf32> to vector<8x256xf32>
    %c32_66 = arith.constant 32 : index
    %c256_67 = arith.constant 256 : index
    %107 = vector.load %arg8[%c32_66, %c256_67] : memref<72x512xf32, #tpu.memory_space<vmem>>, vector<8x256xf32>
    tpu.vector_store %arg8[%c32_66, %c256_67], %106 {strides = array<i32>} : memref<72x512xf32, #tpu.memory_space<vmem>>, vector<8x256xf32>,
    %c0_68 = arith.constant 0 : index
    %c0_69 = arith.constant 0 : index
    %c129 = arith.constant 129 : index
    %108 = vector.load %arg7[%c0_68, %c0_69, %c129] : memref<2x8x512xf32, #tpu.memory_space<vmem>>, vector<1x8x256xf32>
    %109 = vector.shape_cast %108 : vector<1x8x256xf32> to vector<8x256xf32>
    %c0_i32_70 = arith.constant 0 : i32
    %110 = arith.sitofp %c0_i32_70 : i32 to f32
    %111 = vector.shape_cast %37 : vector<1x256xi1> to vector<1x256xi1>
    %112 = vector.broadcast %111 : vector<1x256xi1> to vector<8x256xi1>
    %113 = vector.broadcast %110 : f32 to vector<8x256xf32>
    %114 = arith.select %112, %109, %113 : vector<8x256xi1>, vector<8x256xf32>
    %c40 = arith.constant 40 : index
    %c0_71 = arith.constant 0 : index
    %115 = vector.load %arg8[%c40, %c0_71] : memref<72x512xf32, #tpu.memory_space<vmem>>, vector<8x256xf32>
    tpu.vector_store %arg8[%c40, %c0_71], %114 {strides = array<i32>} : memref<72x512xf32, #tpu.memory_space<vmem>>, vector<8x256xf32>,
    %c1_72 = arith.constant 1 : index
    %c0_73 = arith.constant 0 : index
    %c129_74 = arith.constant 129 : index
    %116 = vector.load %arg7[%c1_72, %c0_73, %c129_74] : memref<2x8x512xf32, #tpu.memory_space<vmem>>, vector<1x8x256xf32>
    %117 = vector.shape_cast %116 : vector<1x8x256xf32> to vector<8x256xf32>
    %c0_i32_75 = arith.constant 0 : i32
    %118 = arith.sitofp %c0_i32_75 : i32 to f32
    %119 = vector.shape_cast %37 : vector<1x256xi1> to vector<1x256xi1>
    %120 = vector.broadcast %119 : vector<1x256xi1> to vector<8x256xi1>
    %121 = vector.broadcast %118 : f32 to vector<8x256xf32>
    %122 = arith.select %120, %117, %121 : vector<8x256xi1>, vector<8x256xf32>
    %c40_76 = arith.constant 40 : index
    %c256_77 = arith.constant 256 : index
    %123 = vector.load %arg8[%c40_76, %c256_77] : memref<72x512xf32, #tpu.memory_space<vmem>>, vector<8x256xf32>
    tpu.vector_store %arg8[%c40_76, %c256_77], %122 {strides = array<i32>} : memref<72x512xf32, #tpu.memory_space<vmem>>, vector<8x256xf32>,
    %c0_78 = arith.constant 0 : index
    %c0_79 = arith.constant 0 : index
    %c143 = arith.constant 143 : index
    %124 = vector.load %arg7[%c0_78, %c0_79, %c143] : memref<2x8x512xf32, #tpu.memory_space<vmem>>, vector<1x8x256xf32>
    %125 = vector.shape_cast %124 : vector<1x8x256xf32> to vector<8x256xf32>
    %c0_i32_80 = arith.constant 0 : i32
    %126 = arith.sitofp %c0_i32_80 : i32 to f32
    %127 = vector.shape_cast %28 : vector<1x256xi1> to vector<1x256xi1>
    %128 = vector.broadcast %127 : vector<1x256xi1> to vector<8x256xi1>
    %129 = vector.broadcast %126 : f32 to vector<8x256xf32>
    %130 = arith.select %128, %125, %129 : vector<8x256xi1>, vector<8x256xf32>
    %c48 = arith.constant 48 : index
    %c0_81 = arith.constant 0 : index
    %131 = vector.load %arg8[%c48, %c0_81] : memref<72x512xf32, #tpu.memory_space<vmem>>, vector<8x256xf32>
    tpu.vector_store %arg8[%c48, %c0_81], %130 {strides = array<i32>} : memref<72x512xf32, #tpu.memory_space<vmem>>, vector<8x256xf32>,
    %c1_82 = arith.constant 1 : index
    %c0_83 = arith.constant 0 : index
    %c143_84 = arith.constant 143 : index
    %132 = vector.load %arg7[%c1_82, %c0_83, %c143_84] : memref<2x8x512xf32, #tpu.memory_space<vmem>>, vector<1x8x256xf32>
    %133 = vector.shape_cast %132 : vector<1x8x256xf32> to vector<8x256xf32>
    %c0_i32_85 = arith.constant 0 : i32
    %134 = arith.sitofp %c0_i32_85 : i32 to f32
    %135 = vector.shape_cast %28 : vector<1x256xi1> to vector<1x256xi1>
    %136 = vector.broadcast %135 : vector<1x256xi1> to vector<8x256xi1>
    %137 = vector.broadcast %134 : f32 to vector<8x256xf32>
    %138 = arith.select %136, %133, %137 : vector<8x256xi1>, vector<8x256xf32>
    %c48_86 = arith.constant 48 : index
    %c256_87 = arith.constant 256 : index
    %139 = vector.load %arg8[%c48_86, %c256_87] : memref<72x512xf32, #tpu.memory_space<vmem>>, vector<8x256xf32>
    tpu.vector_store %arg8[%c48_86, %c256_87], %138 {strides = array<i32>} : memref<72x512xf32, #tpu.memory_space<vmem>>, vector<8x256xf32>,
    %c0_88 = arith.constant 0 : index
    %c0_89 = arith.constant 0 : index
    %c144 = arith.constant 144 : index
    %140 = vector.load %arg7[%c0_88, %c0_89, %c144] : memref<2x8x512xf32, #tpu.memory_space<vmem>>, vector<1x8x256xf32>
    %141 = vector.shape_cast %140 : vector<1x8x256xf32> to vector<8x256xf32>
    %c56 = arith.constant 56 : index
    %c0_90 = arith.constant 0 : index
    %142 = vector.load %arg8[%c56, %c0_90] : memref<72x512xf32, #tpu.memory_space<vmem>>, vector<8x256xf32>
    tpu.vector_store %arg8[%c56, %c0_90], %141 {strides = array<i32>} : memref<72x512xf32, #tpu.memory_space<vmem>>, vector<8x256xf32>,
    %c1_91 = arith.constant 1 : index
    %c0_92 = arith.constant 0 : index
    %c144_93 = arith.constant 144 : index
    %143 = vector.load %arg7[%c1_91, %c0_92, %c144_93] : memref<2x8x512xf32, #tpu.memory_space<vmem>>, vector<1x8x256xf32>
    %144 = vector.shape_cast %143 : vector<1x8x256xf32> to vector<8x256xf32>
    %c56_94 = arith.constant 56 : index
    %c256_95 = arith.constant 256 : index
    %145 = vector.load %arg8[%c56_94, %c256_95] : memref<72x512xf32, #tpu.memory_space<vmem>>, vector<8x256xf32>
    tpu.vector_store %arg8[%c56_94, %c256_95], %144 {strides = array<i32>} : memref<72x512xf32, #tpu.memory_space<vmem>>, vector<8x256xf32>,
    %c0_96 = arith.constant 0 : index
    %c0_97 = arith.constant 0 : index
    %c145 = arith.constant 145 : index
    %146 = vector.load %arg7[%c0_96, %c0_97, %c145] : memref<2x8x512xf32, #tpu.memory_space<vmem>>, vector<1x8x256xf32>
    %147 = vector.shape_cast %146 : vector<1x8x256xf32> to vector<8x256xf32>
    %c0_i32_98 = arith.constant 0 : i32
    %148 = arith.sitofp %c0_i32_98 : i32 to f32
    %149 = vector.shape_cast %37 : vector<1x256xi1> to vector<1x256xi1>
    %150 = vector.broadcast %149 : vector<1x256xi1> to vector<8x256xi1>
    %151 = vector.broadcast %148 : f32 to vector<8x256xf32>
    %152 = arith.select %150, %147, %151 : vector<8x256xi1>, vector<8x256xf32>
    %c64 = arith.constant 64 : index
    %c0_99 = arith.constant 0 : index
    %153 = vector.load %arg8[%c64, %c0_99] : memref<72x512xf32, #tpu.memory_space<vmem>>, vector<8x256xf32>
    tpu.vector_store %arg8[%c64, %c0_99], %152 {strides = array<i32>} : memref<72x512xf32, #tpu.memory_space<vmem>>, vector<8x256xf32>,
    %c1_100 = arith.constant 1 : index
    %c0_101 = arith.constant 0 : index
    %c145_102 = arith.constant 145 : index
    %154 = vector.load %arg7[%c1_100, %c0_101, %c145_102] : memref<2x8x512xf32, #tpu.memory_space<vmem>>, vector<1x8x256xf32>
    %155 = vector.shape_cast %154 : vector<1x8x256xf32> to vector<8x256xf32>
    %c0_i32_103 = arith.constant 0 : i32
    %156 = arith.sitofp %c0_i32_103 : i32 to f32
    %157 = vector.shape_cast %37 : vector<1x256xi1> to vector<1x256xi1>
    %158 = vector.broadcast %157 : vector<1x256xi1> to vector<8x256xi1>
    %159 = vector.broadcast %156 : f32 to vector<8x256xf32>
    %160 = arith.select %158, %155, %159 : vector<8x256xi1>, vector<8x256xf32>
    %c64_104 = arith.constant 64 : index
    %c256_105 = arith.constant 256 : index
    %161 = vector.load %arg8[%c64_104, %c256_105] : memref<72x512xf32, #tpu.memory_space<vmem>>, vector<8x256xf32>
    tpu.vector_store %arg8[%c64_104, %c256_105], %160 {strides = array<i32>} : memref<72x512xf32, #tpu.memory_space<vmem>>, vector<8x256xf32>,
    %c0_106 = arith.constant 0 : index
    %c0_107 = arith.constant 0 : index
    %162 = vector.load %arg2[%c0_106, %c0_107] : memref<8x72xf32, #tpu.memory_space<vmem>>, vector<8x72xf32>
    %c0_108 = arith.constant 0 : index
    %c0_109 = arith.constant 0 : index
    %163 = vector.load %arg8[%c0_108, %c0_109] : memref<72x512xf32, #tpu.memory_space<vmem>>, vector<72x512xf32>
    %cst = arith.constant dense<0.000000e+00> : vector<8x512xf32>
    %164 = tpu.matmul %162, %163, %cst {dimension_numbers = #tpu.dot_dimension_numbers<[1], [0], [0], [1], [0, 0, 1, 1], [], []>} : vector<8x72xf32>, vector<72x512xf32>, vector<8x512xf32> -> vector<8x512xf32>
    %c0_110 = arith.constant 0 : index
    %c0_111 = arith.constant 0 : index
    %165 = vector.load %arg3[%c0_110, %c0_111] : memref<8x1xf32, #tpu.memory_space<vmem>>, vector<8x1xf32>
    %166 = vector.broadcast %165 : vector<8x1xf32> to vector<8x512xf32>
    %167 = arith.addf %164, %166 : vector<8x512xf32>
    %cst_112 = arith.constant 0.000000e+00 : f32
    %168 = vector.broadcast %cst_112 : f32 to vector<8x512xf32>
    %169 = arith.cmpf ogt, %167, %168 : vector<8x512xf32>
    %cst_113 = arith.constant 0.00999999977 : f32
    %170 = vector.broadcast %cst_113 : f32 to vector<8x512xf32>
    %171 = arith.mulf %170, %167 : vector<8x512xf32>
    %172 = arith.select %169, %167, %171 : vector<8x512xi1>, vector<8x512xf32>
    %173 = vector.extract_strided_slice %172 {offsets = [0, 0], sizes = [8, 256], strides = [1, 1]} : vector<8x512xf32> to vector<8x256xf32>
    %c0_114 = arith.constant 0 : index
    %c0_115 = arith.constant 0 : index
    %c128_116 = arith.constant 128 : index
    %174 = vector.load %arg9[%c0_114, %c0_115, %c128_116] : memref<2x8x512xf32, #tpu.memory_space<vmem>>, vector<1x8x256xf32>
    %175 = vector.shape_cast %174 : vector<1x8x256xf32> to vector<8x256xf32>
    %176 = vector.shape_cast %173 : vector<8x256xf32> to vector<1x8x256xf32>
    tpu.vector_store %arg9[%c0_114, %c0_115, %c128_116], %176 {strides = array<i32>} : memref<2x8x512xf32, #tpu.memory_space<vmem>>, vector<1x8x256xf32>,
    %177 = vector.extract_strided_slice %172 {offsets = [0, 256], sizes = [8, 256], strides = [1, 1]} : vector<8x512xf32> to vector<8x256xf32>
    %c1_117 = arith.constant 1 : index
    %c0_118 = arith.constant 0 : index
    %c128_119 = arith.constant 128 : index
    %178 = vector.load %arg9[%c1_117, %c0_118, %c128_119] : memref<2x8x512xf32, #tpu.memory_space<vmem>>, vector<1x8x256xf32>
    %179 = vector.shape_cast %178 : vector<1x8x256xf32> to vector<8x256xf32>
    %180 = vector.shape_cast %177 : vector<8x256xf32> to vector<1x8x256xf32>
    tpu.vector_store %arg9[%c1_117, %c0_118, %c128_119], %180 {strides = array<i32>} : memref<2x8x512xf32, #tpu.memory_space<vmem>>, vector<1x8x256xf32>,
    %c0_120 = arith.constant 0 : index
    %c0_121 = arith.constant 0 : index
    %c111_122 = arith.constant 111 : index
    %181 = vector.load %arg9[%c0_120, %c0_121, %c111_122] : memref<2x8x512xf32, #tpu.memory_space<vmem>>, vector<1x8x256xf32>
    %182 = vector.shape_cast %181 : vector<1x8x256xf32> to vector<8x256xf32>
    %c0_i32_123 = arith.constant 0 : i32
    %183 = arith.sitofp %c0_i32_123 : i32 to f32
    %184 = vector.shape_cast %28 : vector<1x256xi1> to vector<1x256xi1>
    %185 = vector.broadcast %184 : vector<1x256xi1> to vector<8x256xi1>
    %186 = vector.broadcast %183 : f32 to vector<8x256xf32>
    %187 = arith.select %185, %182, %186 : vector<8x256xi1>, vector<8x256xf32>
    %c0_124 = arith.constant 0 : index
    %c0_125 = arith.constant 0 : index
    %188 = vector.load %arg10[%c0_124, %c0_125] : memref<72x512xf32, #tpu.memory_space<vmem>>, vector<8x256xf32>
    tpu.vector_store %arg10[%c0_124, %c0_125], %187 {strides = array<i32>} : memref<72x512xf32, #tpu.memory_space<vmem>>, vector<8x256xf32>,
    %c1_126 = arith.constant 1 : index
    %c0_127 = arith.constant 0 : index
    %c111_128 = arith.constant 111 : index
    %189 = vector.load %arg9[%c1_126, %c0_127, %c111_128] : memref<2x8x512xf32, #tpu.memory_space<vmem>>, vector<1x8x256xf32>
    %190 = vector.shape_cast %189 : vector<1x8x256xf32> to vector<8x256xf32>
    %c0_i32_129 = arith.constant 0 : i32
    %191 = arith.sitofp %c0_i32_129 : i32 to f32
    %192 = vector.shape_cast %28 : vector<1x256xi1> to vector<1x256xi1>
    %193 = vector.broadcast %192 : vector<1x256xi1> to vector<8x256xi1>
    %194 = vector.broadcast %191 : f32 to vector<8x256xf32>
    %195 = arith.select %193, %190, %194 : vector<8x256xi1>, vector<8x256xf32>
    %c0_130 = arith.constant 0 : index
    %c256_131 = arith.constant 256 : index
    %196 = vector.load %arg10[%c0_130, %c256_131] : memref<72x512xf32, #tpu.memory_space<vmem>>, vector<8x256xf32>
    tpu.vector_store %arg10[%c0_130, %c256_131], %195 {strides = array<i32>} : memref<72x512xf32, #tpu.memory_space<vmem>>, vector<8x256xf32>,
    %c0_132 = arith.constant 0 : index
    %c0_133 = arith.constant 0 : index
    %c112_134 = arith.constant 112 : index
    %197 = vector.load %arg9[%c0_132, %c0_133, %c112_134] : memref<2x8x512xf32, #tpu.memory_space<vmem>>, vector<1x8x256xf32>
    %198 = vector.shape_cast %197 : vector<1x8x256xf32> to vector<8x256xf32>
    %c8_135 = arith.constant 8 : index
    %c0_136 = arith.constant 0 : index
    %199 = vector.load %arg10[%c8_135, %c0_136] : memref<72x512xf32, #tpu.memory_space<vmem>>, vector<8x256xf32>
    tpu.vector_store %arg10[%c8_135, %c0_136], %198 {strides = array<i32>} : memref<72x512xf32, #tpu.memory_space<vmem>>, vector<8x256xf32>,
    %c1_137 = arith.constant 1 : index
    %c0_138 = arith.constant 0 : index
    %c112_139 = arith.constant 112 : index
    %200 = vector.load %arg9[%c1_137, %c0_138, %c112_139] : memref<2x8x512xf32, #tpu.memory_space<vmem>>, vector<1x8x256xf32>
    %201 = vector.shape_cast %200 : vector<1x8x256xf32> to vector<8x256xf32>
    %c8_140 = arith.constant 8 : index
    %c256_141 = arith.constant 256 : index
    %202 = vector.load %arg10[%c8_140, %c256_141] : memref<72x512xf32, #tpu.memory_space<vmem>>, vector<8x256xf32>
    tpu.vector_store %arg10[%c8_140, %c256_141], %201 {strides = array<i32>} : memref<72x512xf32, #tpu.memory_space<vmem>>, vector<8x256xf32>,
    %c0_142 = arith.constant 0 : index
    %c0_143 = arith.constant 0 : index
    %c113_144 = arith.constant 113 : index
    %203 = vector.load %arg9[%c0_142, %c0_143, %c113_144] : memref<2x8x512xf32, #tpu.memory_space<vmem>>, vector<1x8x256xf32>
    %204 = vector.shape_cast %203 : vector<1x8x256xf32> to vector<8x256xf32>
    %c0_i32_145 = arith.constant 0 : i32
    %205 = arith.sitofp %c0_i32_145 : i32 to f32
    %206 = vector.shape_cast %37 : vector<1x256xi1> to vector<1x256xi1>
    %207 = vector.broadcast %206 : vector<1x256xi1> to vector<8x256xi1>
    %208 = vector.broadcast %205 : f32 to vector<8x256xf32>
    %209 = arith.select %207, %204, %208 : vector<8x256xi1>, vector<8x256xf32>
    %c16_146 = arith.constant 16 : index
    %c0_147 = arith.constant 0 : index
    %210 = vector.load %arg10[%c16_146, %c0_147] : memref<72x512xf32, #tpu.memory_space<vmem>>, vector<8x256xf32>
    tpu.vector_store %arg10[%c16_146, %c0_147], %209 {strides = array<i32>} : memref<72x512xf32, #tpu.memory_space<vmem>>, vector<8x256xf32>,
    %c1_148 = arith.constant 1 : index
    %c0_149 = arith.constant 0 : index
    %c113_150 = arith.constant 113 : index
    %211 = vector.load %arg9[%c1_148, %c0_149, %c113_150] : memref<2x8x512xf32, #tpu.memory_space<vmem>>, vector<1x8x256xf32>
    %212 = vector.shape_cast %211 : vector<1x8x256xf32> to vector<8x256xf32>
    %c0_i32_151 = arith.constant 0 : i32
    %213 = arith.sitofp %c0_i32_151 : i32 to f32
    %214 = vector.shape_cast %37 : vector<1x256xi1> to vector<1x256xi1>
    %215 = vector.broadcast %214 : vector<1x256xi1> to vector<8x256xi1>
    %216 = vector.broadcast %213 : f32 to vector<8x256xf32>
    %217 = arith.select %215, %212, %216 : vector<8x256xi1>, vector<8x256xf32>
    %c16_152 = arith.constant 16 : index
    %c256_153 = arith.constant 256 : index
    %218 = vector.load %arg10[%c16_152, %c256_153] : memref<72x512xf32, #tpu.memory_space<vmem>>, vector<8x256xf32>
    tpu.vector_store %arg10[%c16_152, %c256_153], %217 {strides = array<i32>} : memref<72x512xf32, #tpu.memory_space<vmem>>, vector<8x256xf32>,
    %c0_154 = arith.constant 0 : index
    %c0_155 = arith.constant 0 : index
    %c127_156 = arith.constant 127 : index
    %219 = vector.load %arg9[%c0_154, %c0_155, %c127_156] : memref<2x8x512xf32, #tpu.memory_space<vmem>>, vector<1x8x256xf32>
    %220 = vector.shape_cast %219 : vector<1x8x256xf32> to vector<8x256xf32>
    %c0_i32_157 = arith.constant 0 : i32
    %221 = arith.sitofp %c0_i32_157 : i32 to f32
    %222 = vector.shape_cast %28 : vector<1x256xi1> to vector<1x256xi1>
    %223 = vector.broadcast %222 : vector<1x256xi1> to vector<8x256xi1>
    %224 = vector.broadcast %221 : f32 to vector<8x256xf32>
    %225 = arith.select %223, %220, %224 : vector<8x256xi1>, vector<8x256xf32>
    %c24_158 = arith.constant 24 : index
    %c0_159 = arith.constant 0 : index
    %226 = vector.load %arg10[%c24_158, %c0_159] : memref<72x512xf32, #tpu.memory_space<vmem>>, vector<8x256xf32>
    tpu.vector_store %arg10[%c24_158, %c0_159], %225 {strides = array<i32>} : memref<72x512xf32, #tpu.memory_space<vmem>>, vector<8x256xf32>,
    %c1_160 = arith.constant 1 : index
    %c0_161 = arith.constant 0 : index
    %c127_162 = arith.constant 127 : index
    %227 = vector.load %arg9[%c1_160, %c0_161, %c127_162] : memref<2x8x512xf32, #tpu.memory_space<vmem>>, vector<1x8x256xf32>
    %228 = vector.shape_cast %227 : vector<1x8x256xf32> to vector<8x256xf32>
    %c0_i32_163 = arith.constant 0 : i32
    %229 = arith.sitofp %c0_i32_163 : i32 to f32
    %230 = vector.shape_cast %28 : vector<1x256xi1> to vector<1x256xi1>
    %231 = vector.broadcast %230 : vector<1x256xi1> to vector<8x256xi1>
    %232 = vector.broadcast %229 : f32 to vector<8x256xf32>
    %233 = arith.select %231, %228, %232 : vector<8x256xi1>, vector<8x256xf32>
    %c24_164 = arith.constant 24 : index
    %c256_165 = arith.constant 256 : index
    %234 = vector.load %arg10[%c24_164, %c256_165] : memref<72x512xf32, #tpu.memory_space<vmem>>, vector<8x256xf32>
    tpu.vector_store %arg10[%c24_164, %c256_165], %233 {strides = array<i32>} : memref<72x512xf32, #tpu.memory_space<vmem>>, vector<8x256xf32>,
    %c0_166 = arith.constant 0 : index
    %c0_167 = arith.constant 0 : index
    %c128_168 = arith.constant 128 : index
    %235 = vector.load %arg9[%c0_166, %c0_167, %c128_168] : memref<2x8x512xf32, #tpu.memory_space<vmem>>, vector<1x8x256xf32>
    %236 = vector.shape_cast %235 : vector<1x8x256xf32> to vector<8x256xf32>
    %c32_169 = arith.constant 32 : index
    %c0_170 = arith.constant 0 : index
    %237 = vector.load %arg10[%c32_169, %c0_170] : memref<72x512xf32, #tpu.memory_space<vmem>>, vector<8x256xf32>
    tpu.vector_store %arg10[%c32_169, %c0_170], %236 {strides = array<i32>} : memref<72x512xf32, #tpu.memory_space<vmem>>, vector<8x256xf32>,
    %c1_171 = arith.constant 1 : index
    %c0_172 = arith.constant 0 : index
    %c128_173 = arith.constant 128 : index
    %238 = vector.load %arg9[%c1_171, %c0_172, %c128_173] : memref<2x8x512xf32, #tpu.memory_space<vmem>>, vector<1x8x256xf32>
    %239 = vector.shape_cast %238 : vector<1x8x256xf32> to vector<8x256xf32>
    %c32_174 = arith.constant 32 : index
    %c256_175 = arith.constant 256 : index
    %240 = vector.load %arg10[%c32_174, %c256_175] : memref<72x512xf32, #tpu.memory_space<vmem>>, vector<8x256xf32>
    tpu.vector_store %arg10[%c32_174, %c256_175], %239 {strides = array<i32>} : memref<72x512xf32, #tpu.memory_space<vmem>>, vector<8x256xf32>,
    %c0_176 = arith.constant 0 : index
    %c0_177 = arith.constant 0 : index
    %c129_178 = arith.constant 129 : index
    %241 = vector.load %arg9[%c0_176, %c0_177, %c129_178] : memref<2x8x512xf32, #tpu.memory_space<vmem>>, vector<1x8x256xf32>
    %242 = vector.shape_cast %241 : vector<1x8x256xf32> to vector<8x256xf32>
    %c0_i32_179 = arith.constant 0 : i32
    %243 = arith.sitofp %c0_i32_179 : i32 to f32
    %244 = vector.shape_cast %37 : vector<1x256xi1> to vector<1x256xi1>
    %245 = vector.broadcast %244 : vector<1x256xi1> to vector<8x256xi1>
    %246 = vector.broadcast %243 : f32 to vector<8x256xf32>
    %247 = arith.select %245, %242, %246 : vector<8x256xi1>, vector<8x256xf32>
    %c40_180 = arith.constant 40 : index
    %c0_181 = arith.constant 0 : index
    %248 = vector.load %arg10[%c40_180, %c0_181] : memref<72x512xf32, #tpu.memory_space<vmem>>, vector<8x256xf32>
    tpu.vector_store %arg10[%c40_180, %c0_181], %247 {strides = array<i32>} : memref<72x512xf32, #tpu.memory_space<vmem>>, vector<8x256xf32>,
    %c1_182 = arith.constant 1 : index
    %c0_183 = arith.constant 0 : index
    %c129_184 = arith.constant 129 : index
    %249 = vector.load %arg9[%c1_182, %c0_183, %c129_184] : memref<2x8x512xf32, #tpu.memory_space<vmem>>, vector<1x8x256xf32>
    %250 = vector.shape_cast %249 : vector<1x8x256xf32> to vector<8x256xf32>
    %c0_i32_185 = arith.constant 0 : i32
    %251 = arith.sitofp %c0_i32_185 : i32 to f32
    %252 = vector.shape_cast %37 : vector<1x256xi1> to vector<1x256xi1>
    %253 = vector.broadcast %252 : vector<1x256xi1> to vector<8x256xi1>
    %254 = vector.broadcast %251 : f32 to vector<8x256xf32>
    %255 = arith.select %253, %250, %254 : vector<8x256xi1>, vector<8x256xf32>
    %c40_186 = arith.constant 40 : index
    %c256_187 = arith.constant 256 : index
    %256 = vector.load %arg10[%c40_186, %c256_187] : memref<72x512xf32, #tpu.memory_space<vmem>>, vector<8x256xf32>
    tpu.vector_store %arg10[%c40_186, %c256_187], %255 {strides = array<i32>} : memref<72x512xf32, #tpu.memory_space<vmem>>, vector<8x256xf32>,
    %c0_188 = arith.constant 0 : index
    %c0_189 = arith.constant 0 : index
    %c143_190 = arith.constant 143 : index
    %257 = vector.load %arg9[%c0_188, %c0_189, %c143_190] : memref<2x8x512xf32, #tpu.memory_space<vmem>>, vector<1x8x256xf32>
    %258 = vector.shape_cast %257 : vector<1x8x256xf32> to vector<8x256xf32>
    %c0_i32_191 = arith.constant 0 : i32
    %259 = arith.sitofp %c0_i32_191 : i32 to f32
    %260 = vector.shape_cast %28 : vector<1x256xi1> to vector<1x256xi1>
    %261 = vector.broadcast %260 : vector<1x256xi1> to vector<8x256xi1>
    %262 = vector.broadcast %259 : f32 to vector<8x256xf32>
    %263 = arith.select %261, %258, %262 : vector<8x256xi1>, vector<8x256xf32>
    %c48_192 = arith.constant 48 : index
    %c0_193 = arith.constant 0 : index
    %264 = vector.load %arg10[%c48_192, %c0_193] : memref<72x512xf32, #tpu.memory_space<vmem>>, vector<8x256xf32>
    tpu.vector_store %arg10[%c48_192, %c0_193], %263 {strides = array<i32>} : memref<72x512xf32, #tpu.memory_space<vmem>>, vector<8x256xf32>,
    %c1_194 = arith.constant 1 : index
    %c0_195 = arith.constant 0 : index
    %c143_196 = arith.constant 143 : index
    %265 = vector.load %arg9[%c1_194, %c0_195, %c143_196] : memref<2x8x512xf32, #tpu.memory_space<vmem>>, vector<1x8x256xf32>
    %266 = vector.shape_cast %265 : vector<1x8x256xf32> to vector<8x256xf32>
    %c0_i32_197 = arith.constant 0 : i32
    %267 = arith.sitofp %c0_i32_197 : i32 to f32
    %268 = vector.shape_cast %28 : vector<1x256xi1> to vector<1x256xi1>
    %269 = vector.broadcast %268 : vector<1x256xi1> to vector<8x256xi1>
    %270 = vector.broadcast %267 : f32 to vector<8x256xf32>
    %271 = arith.select %269, %266, %270 : vector<8x256xi1>, vector<8x256xf32>
    %c48_198 = arith.constant 48 : index
    %c256_199 = arith.constant 256 : index
    %272 = vector.load %arg10[%c48_198, %c256_199] : memref<72x512xf32, #tpu.memory_space<vmem>>, vector<8x256xf32>
    tpu.vector_store %arg10[%c48_198, %c256_199], %271 {strides = array<i32>} : memref<72x512xf32, #tpu.memory_space<vmem>>, vector<8x256xf32>,
    %c0_200 = arith.constant 0 : index
    %c0_201 = arith.constant 0 : index
    %c144_202 = arith.constant 144 : index
    %273 = vector.load %arg9[%c0_200, %c0_201, %c144_202] : memref<2x8x512xf32, #tpu.memory_space<vmem>>, vector<1x8x256xf32>
    %274 = vector.shape_cast %273 : vector<1x8x256xf32> to vector<8x256xf32>
    %c56_203 = arith.constant 56 : index
    %c0_204 = arith.constant 0 : index
    %275 = vector.load %arg10[%c56_203, %c0_204] : memref<72x512xf32, #tpu.memory_space<vmem>>, vector<8x256xf32>
    tpu.vector_store %arg10[%c56_203, %c0_204], %274 {strides = array<i32>} : memref<72x512xf32, #tpu.memory_space<vmem>>, vector<8x256xf32>,
    %c1_205 = arith.constant 1 : index
    %c0_206 = arith.constant 0 : index
    %c144_207 = arith.constant 144 : index
    %276 = vector.load %arg9[%c1_205, %c0_206, %c144_207] : memref<2x8x512xf32, #tpu.memory_space<vmem>>, vector<1x8x256xf32>
    %277 = vector.shape_cast %276 : vector<1x8x256xf32> to vector<8x256xf32>
    %c56_208 = arith.constant 56 : index
    %c256_209 = arith.constant 256 : index
    %278 = vector.load %arg10[%c56_208, %c256_209] : memref<72x512xf32, #tpu.memory_space<vmem>>, vector<8x256xf32>
    tpu.vector_store %arg10[%c56_208, %c256_209], %277 {strides = array<i32>} : memref<72x512xf32, #tpu.memory_space<vmem>>, vector<8x256xf32>,
    %c0_210 = arith.constant 0 : index
    %c0_211 = arith.constant 0 : index
    %c145_212 = arith.constant 145 : index
    %279 = vector.load %arg9[%c0_210, %c0_211, %c145_212] : memref<2x8x512xf32, #tpu.memory_space<vmem>>, vector<1x8x256xf32>
    %280 = vector.shape_cast %279 : vector<1x8x256xf32> to vector<8x256xf32>
    %c0_i32_213 = arith.constant 0 : i32
    %281 = arith.sitofp %c0_i32_213 : i32 to f32
    %282 = vector.shape_cast %37 : vector<1x256xi1> to vector<1x256xi1>
    %283 = vector.broadcast %282 : vector<1x256xi1> to vector<8x256xi1>
    %284 = vector.broadcast %281 : f32 to vector<8x256xf32>
    %285 = arith.select %283, %280, %284 : vector<8x256xi1>, vector<8x256xf32>
    %c64_214 = arith.constant 64 : index
    %c0_215 = arith.constant 0 : index
    %286 = vector.load %arg10[%c64_214, %c0_215] : memref<72x512xf32, #tpu.memory_space<vmem>>, vector<8x256xf32>
    tpu.vector_store %arg10[%c64_214, %c0_215], %285 {strides = array<i32>} : memref<72x512xf32, #tpu.memory_space<vmem>>, vector<8x256xf32>,
    %c1_216 = arith.constant 1 : index
    %c0_217 = arith.constant 0 : index
    %c145_218 = arith.constant 145 : index
    %287 = vector.load %arg9[%c1_216, %c0_217, %c145_218] : memref<2x8x512xf32, #tpu.memory_space<vmem>>, vector<1x8x256xf32>
    %288 = vector.shape_cast %287 : vector<1x8x256xf32> to vector<8x256xf32>
    %c0_i32_219 = arith.constant 0 : i32
    %289 = arith.sitofp %c0_i32_219 : i32 to f32
    %290 = vector.shape_cast %37 : vector<1x256xi1> to vector<1x256xi1>
    %291 = vector.broadcast %290 : vector<1x256xi1> to vector<8x256xi1>
    %292 = vector.broadcast %289 : f32 to vector<8x256xf32>
    %293 = arith.select %291, %288, %292 : vector<8x256xi1>, vector<8x256xf32>
    %c64_220 = arith.constant 64 : index
    %c256_221 = arith.constant 256 : index
    %294 = vector.load %arg10[%c64_220, %c256_221] : memref<72x512xf32, #tpu.memory_space<vmem>>, vector<8x256xf32>
    tpu.vector_store %arg10[%c64_220, %c256_221], %293 {strides = array<i32>} : memref<72x512xf32, #tpu.memory_space<vmem>>, vector<8x256xf32>,
    %c0_222 = arith.constant 0 : index
    %c0_223 = arith.constant 0 : index
    %295 = vector.load %arg4[%c0_222, %c0_223] : memref<8x72xf32, #tpu.memory_space<vmem>>, vector<8x72xf32>
    %c0_224 = arith.constant 0 : index
    %c0_225 = arith.constant 0 : index
    %296 = vector.load %arg10[%c0_224, %c0_225] : memref<72x512xf32, #tpu.memory_space<vmem>>, vector<72x512xf32>
    %cst_226 = arith.constant dense<0.000000e+00> : vector<8x512xf32>
    %297 = tpu.matmul %295, %296, %cst_226 {dimension_numbers = #tpu.dot_dimension_numbers<[1], [0], [0], [1], [0, 0, 1, 1], [], []>} : vector<8x72xf32>, vector<72x512xf32>, vector<8x512xf32> -> vector<8x512xf32>
    %c0_227 = arith.constant 0 : index
    %c0_228 = arith.constant 0 : index
    %298 = vector.load %arg5[%c0_227, %c0_228] : memref<8x1xf32, #tpu.memory_space<vmem>>, vector<8x1xf32>
    %299 = vector.broadcast %298 : vector<8x1xf32> to vector<8x512xf32>
    %300 = arith.addf %297, %299 : vector<8x512xf32>
    %cst_229 = arith.constant 0.000000e+00 : f32
    %301 = vector.broadcast %cst_229 : f32 to vector<8x512xf32>
    %302 = arith.cmpf ogt, %300, %301 : vector<8x512xf32>
    %cst_230 = arith.constant 0.00999999977 : f32
    %303 = vector.broadcast %cst_230 : f32 to vector<8x512xf32>
    %304 = arith.mulf %303, %300 : vector<8x512xf32>
    %305 = arith.select %302, %300, %304 : vector<8x512xi1>, vector<8x512xf32>
    %306 = vector.extract_strided_slice %305 {offsets = [0, 0], sizes = [8, 256], strides = [1, 1]} : vector<8x512xf32> to vector<8x256xf32>
    %c0_231 = arith.constant 0 : index
    %c0_232 = arith.constant 0 : index
    %c0_233 = arith.constant 0 : index
    %307 = vector.load %arg6[%c0_231, %c0_232, %c0_233] : memref<2x8x256xf32, #tpu.memory_space<vmem>>, vector<1x8x256xf32>
    %308 = vector.shape_cast %307 : vector<1x8x256xf32> to vector<8x256xf32>
    %309 = vector.shape_cast %306 : vector<8x256xf32> to vector<1x8x256xf32>
    tpu.vector_store %arg6[%c0_231, %c0_232, %c0_233], %309 {strides = array<i32>} : memref<2x8x256xf32, #tpu.memory_space<vmem>>, vector<1x8x256xf32>,
    %310 = vector.extract_strided_slice %305 {offsets = [0, 256], sizes = [8, 256], strides = [1, 1]} : vector<8x512xf32> to vector<8x256xf32>
    %c1_234 = arith.constant 1 : index
    %c0_235 = arith.constant 0 : index
    %c0_236 = arith.constant 0 : index
    %311 = vector.load %arg6[%c1_234, %c0_235, %c0_236] : memref<2x8x256xf32, #tpu.memory_space<vmem>>, vector<1x8x256xf32>
    %312 = vector.shape_cast %311 : vector<1x8x256xf32> to vector<8x256xf32>
    %313 = vector.shape_cast %310 : vector<8x256xf32> to vector<1x8x256xf32>
    tpu.vector_store %arg6[%c1_234, %c0_235, %c0_236], %313 {strides = array<i32>} : memref<2x8x256xf32, #tpu.memory_space<vmem>>, vector<1x8x256xf32>,
    return
  }
  func.func @transform_0(%arg0: i32) -> (i32, i32, i32) {
    %c0_i32 = arith.constant 0 : i32
    %c0_i32_0 = arith.constant 0 : i32
    %c0_i32_1 = arith.constant 0 : i32
    return %arg0, %c0_i32, %c0_i32_0 : i32, i32, i32
  }
  func.func @transform_1(%arg0: i32) -> (i32, i32) {
    %c0_i32 = arith.constant 0 : i32
    %c0_i32_0 = arith.constant 0 : i32
    %c0_i32_1 = arith.constant 0 : i32
    return %c0_i32, %c0_i32_0 : i32, i32
  }
  func.func @transform_2(%arg0: i32) -> (i32, i32) {
    %c0_i32 = arith.constant 0 : i32
    %c0_i32_0 = arith.constant 0 : i32
    %c0_i32_1 = arith.constant 0 : i32
    return %c0_i32, %c0_i32_0 : i32, i32
  }
  func.func @transform_3(%arg0: i32) -> (i32, i32) {
    %c0_i32 = arith.constant 0 : i32
    %c0_i32_0 = arith.constant 0 : i32
    %c0_i32_1 = arith.constant 0 : i32
    return %c0_i32, %c0_i32_0 : i32, i32
  }
  func.func @transform_4(%arg0: i32) -> (i32, i32) {
    %c0_i32 = arith.constant 0 : i32
    %c0_i32_0 = arith.constant 0 : i32
    %c0_i32_1 = arith.constant 0 : i32
    return %c0_i32, %c0_i32_0 : i32, i32
  }
  func.func @transform_5(%arg0: i32) -> (i32, i32, i32) {
    %c0_i32 = arith.constant 0 : i32
    %c0_i32_0 = arith.constant 0 : i32
    %c0_i32_1 = arith.constant 0 : i32
    return %arg0, %c0_i32, %c0_i32_0 : i32, i32, i32
  }
}

</mosaic_0001>

<llo_original>
// kernel: tpu_custom_call.1
$region0: #{tpu_custom_call.1}
  #allocation0 [shape = 'u32[]', space=smem, size = 0x4, offset = 0x4, fixed_abs, tag = 'smem constant byte address 0x4 - core index']
  #allocation1 [shape = 'u32[144,128]{1,0:T(1,128)}', space=vmem, size = 0x12000, scoped, tag = 'internal scratch']
  #allocation2 [shape = 'f32[2,8,512]{2,1,0:T(8,128)}', space=vmem, size = 0x8000, scoped, tag = 'scratch operand']
  #allocation3 [shape = 'f32[72,512]{1,0:T(8,128)}', space=vmem, size = 0x24000, scoped, tag = 'scratch operand']
  #allocation4 [shape = 'f32[2,8,512]{2,1,0:T(8,128)}', space=vmem, size = 0x8000, scoped, tag = 'scratch operand']
  #allocation5 [shape = 'f32[72,512]{1,0:T(8,128)}', space=vmem, size = 0x24000, scoped, tag = 'scratch operand']
  %s0 = inlined_call_operand.vmem [shape: f32[2,4,256], index: 0, kind: input, shape index: {}]
  %s1 = inlined_call_operand.hbm [shape: f32[8,72], index: 1, kind: input, shape index: {}]
  %s2 = inlined_call_operand.vmem [shape: f32[8,1], index: 2, kind: input, shape index: {}]
  %s3 = inlined_call_operand.vmem [shape: f32[8,72], index: 3, kind: input, shape index: {}]
  %s4 = inlined_call_operand.vmem [shape: f32[8,1], index: 4, kind: input, shape index: {}]
  %s5 = inlined_call_operand.hbm [shape: f32[2,8,256], index: 5, kind: output, shape index: {}]
  %s6 = sld [smem:[#allocation0]]
  $region38: #{tpu_custom_call.1} parent=0
    _
  %s8 = ssub.s32 1, %s6
  %s9 = scalar_select 0, %s8, %s6
  $region1: #{tpu_custom_call.1} parent=0
    #allocation6 [shape = 'u8[4096]{0}', space=vmem, size = 0x1000, scoped, tag = 'input window, operand 1, single buffered']
    #allocation7 [shape = 's32[1]{0}', space=sflag, size = 0x4, scoped, tag = 'scoped memory for tpu_custom_call.1']
    #allocation8 [shape = 's32[1]{0}', space=sflag, size = 0x4, scoped, tag = 'scoped memory for tpu_custom_call.1']
    #allocation9 [shape = 'u8[16384]{0}', space=vmem, size = 0x4000, scoped, tag = 'output window, operand 0, single buffered']
    %10 = vsyncpa [#allocation7], 0
    %11 = vsyncpa [#allocation8], 0
    // Predicated region
    $region2: #{tpu_custom_call.1} parent=1 // pred_check
      _
    $region3: #{tpu_custom_call.1} parent=1 // pred_check_branch
      %13 = sbr.rel (0) target = $region5
    $region4: #{tpu_custom_call.1} parent=1 // pred_region
      _
    $region5: #{tpu_custom_call.1} parent=1 // pred_fallthru
      _
    // Predicated region
    $region6: #{tpu_custom_call.1} parent=1 // pred_check
      _
    $region7: #{tpu_custom_call.1} parent=1 // pred_check_branch
      %15 = sbr.rel (0) target = $region9
    $region8: #{tpu_custom_call.1} parent=1 // pred_region
      %s17 = ssub.s32 128, 128
      %18 = vsyncadd [#allocation7], %s17
      %s20 = sshll.u32 [#allocation6], 4
      %s21 = int_to_ptr.vmem [resolvable:$true] %s20
      %23 = dma.hbm_to_vmem [thread:$0]  %s1, 128, %s21, [#allocation7]
    $region9: #{tpu_custom_call.1} parent=1 // pred_fallthru
      _
    // Predicated region
    $region10: #{tpu_custom_call.1} parent=1 // pred_check
      _
    $region11: #{tpu_custom_call.1} parent=1 // pred_check_branch
      %25 = sbr.rel (0) target = $region13
    $region12: #{tpu_custom_call.1} parent=1 // pred_region
      _
    $region13: #{tpu_custom_call.1} parent=1 // pred_fallthru
      _
    // Predicated region
    $region14: #{tpu_custom_call.1} parent=1 // pred_check
      _
    $region15: #{tpu_custom_call.1} parent=1 // pred_check_branch
      %27 = sbr.rel (0) target = $region17
    $region16: #{tpu_custom_call.1} parent=1 // pred_region
      _
    $region17: #{tpu_custom_call.1} parent=1 // pred_fallthru
      _
    // Predicated region
    $region18: #{tpu_custom_call.1} parent=1 // pred_check
      _
    $region19: #{tpu_custom_call.1} parent=1 // pred_check_branch
      %29 = sbr.rel (0) target = $region21
    $region20: #{tpu_custom_call.1} parent=1 // pred_region
      _
    $region21: #{tpu_custom_call.1} parent=1 // pred_fallthru
      _
    // Predicated region
    $region22: #{tpu_custom_call.1} parent=1 // pred_check
      _
    $region23: #{tpu_custom_call.1} parent=1 // pred_check_branch
      %31 = sbr.rel (0) target = $region25
    $region24: #{tpu_custom_call.1} parent=1 // pred_region
      %32 = dma.done [#allocation7], 128
    $region25: #{tpu_custom_call.1} parent=1 // pred_fallthru
      _
    %p33 = scmp.eq.s32.totalorder 0, 0
    // Predicated region
    $region26: #{tpu_custom_call.1} parent=1 // pred_check
      %p34 = pneg %p33
    $region27: #{tpu_custom_call.1} parent=1 // pred_check_branch
      %36 = sbr.rel (%p34) target = $region29
    $region28: #{tpu_custom_call.1} parent=1 // pred_region
      %37 = vst [vmem:[#allocation2] sm:$0xff] 0.0
      %38 = vst [vmem:[#allocation2 + $0x8] sm:$0xff] 0.0
      %39 = vst [vmem:[#allocation2 + $0x10] sm:$0xff] 0.0
      %40 = vst [vmem:[#allocation2 + $0x18] sm:$0xff] 0.0
      %41 = vst [vmem:[#allocation2 + $0x20] sm:$0xff] 0.0
      %42 = vst [vmem:[#allocation2 + $0x28] sm:$0xff] 0.0
      %43 = vst [vmem:[#allocation2 + $0x30] sm:$0xff] 0.0
      %44 = vst [vmem:[#allocation2 + $0x38] sm:$0xff] 0.0
      %45 = vst [vmem:[#allocation4] sm:$0xff] 0.0
      %46 = vst [vmem:[#allocation4 + $0x8] sm:$0xff] 0.0
      %47 = vst [vmem:[#allocation4 + $0x10] sm:$0xff] 0.0
      %48 = vst [vmem:[#allocation4 + $0x18] sm:$0xff] 0.0
      %49 = vst [vmem:[#allocation4 + $0x20] sm:$0xff] 0.0
      %50 = vst [vmem:[#allocation4 + $0x28] sm:$0xff] 0.0
      %51 = vst [vmem:[#allocation4 + $0x30] sm:$0xff] 0.0
      %52 = vst [vmem:[#allocation4 + $0x38] sm:$0xff] 0.0
    $region29: #{tpu_custom_call.1} parent=1 // pred_fallthru
      _
    %v53 = vlaneseq
    %v54 = vand.u32 %v53, 127
    %v55 = vadd.s32 %v54, 128
    %vm56 = vcmp.lt.s32.totalorder %v54, 0
    %v57 = vsub.s32 0, %v54
    %v58 = vsel %vm56, %v57, %v54
    %v59 = vshrl.u32 %v58, 4
    %v60 = vand.u32 %v58, 15
    %v61 = vsub.s32 0, %v60
    %v62 = vsel %vm56, %v61, %v60
    %vm63 = vcmp.lt.s32.totalorder %v55, 0
    %v64 = vsub.s32 0, %v55
    %v65 = vsel %vm63, %v64, %v55
    %v66 = vshrl.u32 %v65, 4
    %v67 = vand.u32 %v65, 15
    %v68 = vsub.s32 0, %v67
    %v69 = vsel %vm63, %v68, %v67
    %vm70 = vcmp.ne.s32.totalorder %v62, 0
    %vm71 = vcmp.ne.s32.totalorder %v69, 0
    %vm72 = vcmp.lt.s32.totalorder %v62, 0
    %vm73 = vcmp.lt.s32.totalorder %v69, 0
    %vm74 = vmand %vm72, %vm70
    %vm75 = vmand %vm73, %vm71
    %v76 = vadd.s32 %v62, 16
    %v77 = vadd.s32 %v69, 16
    %v78 = vsel %vm74, %v76, %v62
    %v79 = vsel %vm75, %v77, %v69
    %v80 = vadd.s32 %v78, 4294967295
    %v81 = vadd.s32 %v79, 4294967295
    %vm82 = vcmp.ge.s32.totalorder %v80, 0
    %vm83 = vcmp.ge.s32.totalorder %v81, 0
    %vm84 = vcmp.lt.s32.totalorder %v80, 16
    %vm85 = vcmp.lt.s32.totalorder %v81, 16
    %vm86 = vmand %vm82, %vm84
    %vm87 = vmand %vm83, %vm85
    %v88 = vadd.s32 %v78, 1
    %v89 = vadd.s32 %v79, 1
    %vm90 = vcmp.ge.s32.totalorder %v88, 0
    %vm91 = vcmp.ge.s32.totalorder %v89, 0
    %vm92 = vcmp.lt.s32.totalorder %v88, 16
    %vm93 = vcmp.lt.s32.totalorder %v89, 16
    %vm94 = vmand %vm90, %vm92
    %vm95 = vmand %vm91, %vm93
    %v96 = vld [vmem:[%s0] sm:$0xff]
    %v98 = vcombine.high %v96, %v96
    %100 = vst [vmem:[#allocation2 + $0x8] sm:$0xf] %v96
    %101 = vst [vmem:[#allocation2 + $0x10] sm:$0xf] %v98
    %s102 = scalar_lea.vmem %s0, 8
    %v103 = vld [vmem:[%s102] sm:$0xff]
    %v105 = vcombine.high %v103, %v103
    %s107 = scalar_lea.vmem [#allocation2], 32
    %108 = vst [vmem:[%s107 + $0x8] sm:$0xf] %v103
    %109 = vst [vmem:[%s107 + $0x10] sm:$0xf] %v105
    %v110 = vld [vmem:[#allocation2] sm:$0xff]
    %v111 = vld [vmem:[#allocation2 + $0x8] sm:$0xff]
    %v112 = vld [vmem:[#allocation2 + $0x10] sm:$0xff]
    %v113 = vsel %vm86, 1, 0
    %v114 = vsel %vm87, 1, 0
    %vm115 = vcmp.eq.s32.totalorder %v113, 1
    %vm116 = vcmp.eq.s32.totalorder %v114, 1
    %120 = vrot.lane.b32.xlu0 %v110, 17
    %v121 = vpop.permute.xlu0 %120
    %122 = vrot.lane.b32.xlu0 %v111, 17
    %v123 = vpop.permute.xlu0 %122
    %124 = vrot.lane.b32.xlu0 %v112, 17
    %v125 = vpop.permute.xlu0 %124
    %vm126 = vcmask 138240
    %v127 = vsel %vm126, %v121, %v123
    %v128 = vsel %vm126, %v123, %v125
    %v131 = vsel %vm115, %v127, 0.0
    %v132 = vsel %vm116, %v128, 0.0
    %133 = vst [vmem:[#allocation3] sm:$0xff] %v131
    %134 = vst [vmem:[#allocation3 + $0x8] sm:$0xff] %v132
    %v135 = vld [vmem:[%s107] sm:$0xff]
    %v136 = vld [vmem:[%s107 + $0x8] sm:$0xff]
    %v137 = vld [vmem:[%s107 + $0x10] sm:$0xff]
    %141 = vrot.lane.b32.xlu0 %v135, 17
    %v142 = vpop.permute.xlu0 %141
    %143 = vrot.lane.b32.xlu0 %v136, 17
    %v144 = vpop.permute.xlu0 %143
    %145 = vrot.lane.b32.xlu0 %v137, 17
    %v146 = vpop.permute.xlu0 %145
    %v147 = vsel %vm126, %v142, %v144
    %v148 = vsel %vm126, %v144, %v146
    %v151 = vsel %vm115, %v147, 0.0
    %v152 = vsel %vm116, %v148, 0.0
    %153 = vst [vmem:[#allocation3 + $0x10] sm:$0xff] %v151
    %154 = vst [vmem:[#allocation3 + $0x18] sm:$0xff] %v152
    %v155 = vld [vmem:[#allocation2] sm:$0xff]
    %v156 = vld [vmem:[#allocation2 + $0x8] sm:$0xff]
    %v157 = vld [vmem:[#allocation2 + $0x10] sm:$0xff]
    %161 = vrot.lane.b32.xlu0 %v155, 16
    %v162 = vpop.permute.xlu0 %161
    %163 = vrot.lane.b32.xlu0 %v156, 16
    %v164 = vpop.permute.xlu0 %163
    %165 = vrot.lane.b32.xlu0 %v157, 16
    %v166 = vpop.permute.xlu0 %165
    %vm167 = vcmask 130048
    %v168 = vsel %vm167, %v162, %v164
    %v169 = vsel %vm167, %v164, %v166
    %172 = vst [vmem:[#allocation3 + $0x20] sm:$0xff] %v168
    %173 = vst [vmem:[#allocation3 + $0x28] sm:$0xff] %v169
    %v174 = vld [vmem:[%s107] sm:$0xff]
    %v175 = vld [vmem:[%s107 + $0x8] sm:$0xff]
    %v176 = vld [vmem:[%s107 + $0x10] sm:$0xff]
    %180 = vrot.lane.b32.xlu0 %v174, 16
    %v181 = vpop.permute.xlu0 %180
    %182 = vrot.lane.b32.xlu0 %v175, 16
    %v183 = vpop.permute.xlu0 %182
    %184 = vrot.lane.b32.xlu0 %v176, 16
    %v185 = vpop.permute.xlu0 %184
    %v186 = vsel %vm167, %v181, %v183
    %v187 = vsel %vm167, %v183, %v185
    %190 = vst [vmem:[#allocation3 + $0x30] sm:$0xff] %v186
    %191 = vst [vmem:[#allocation3 + $0x38] sm:$0xff] %v187
    %v192 = vld [vmem:[#allocation2] sm:$0xff]
    %v193 = vld [vmem:[#allocation2 + $0x8] sm:$0xff]
    %v194 = vld [vmem:[#allocation2 + $0x10] sm:$0xff]
    %v195 = vsel %vm94, 1, 0
    %v196 = vsel %vm95, 1, 0
    %vm197 = vcmp.eq.s32.totalorder %v195, 1
    %vm198 = vcmp.eq.s32.totalorder %v196, 1
    %202 = vrot.lane.b32.xlu0 %v192, 15
    %v203 = vpop.permute.xlu0 %202
    %204 = vrot.lane.b32.xlu0 %v193, 15
    %v205 = vpop.permute.xlu0 %204
    %206 = vrot.lane.b32.xlu0 %v194, 15
    %v207 = vpop.permute.xlu0 %206
    %vm208 = vcmask 121856
    %v209 = vsel %vm208, %v203, %v205
    %v210 = vsel %vm208, %v205, %v207
    %v213 = vsel %vm197, %v209, 0.0
    %v214 = vsel %vm198, %v210, 0.0
    %215 = vst [vmem:[#allocation3 + $0x40] sm:$0xff] %v213
    %216 = vst [vmem:[#allocation3 + $0x48] sm:$0xff] %v214
    %v217 = vld [vmem:[%s107] sm:$0xff]
    %v218 = vld [vmem:[%s107 + $0x8] sm:$0xff]
    %v219 = vld [vmem:[%s107 + $0x10] sm:$0xff]
    %223 = vrot.lane.b32.xlu0 %v217, 15
    %v224 = vpop.permute.xlu0 %223
    %225 = vrot.lane.b32.xlu0 %v218, 15
    %v226 = vpop.permute.xlu0 %225
    %227 = vrot.lane.b32.xlu0 %v219, 15
    %v228 = vpop.permute.xlu0 %227
    %v229 = vsel %vm208, %v224, %v226
    %v230 = vsel %vm208, %v226, %v228
    %v233 = vsel %vm197, %v229, 0.0
    %v234 = vsel %vm198, %v230, 0.0
    %235 = vst [vmem:[#allocation3 + $0x50] sm:$0xff] %v233
    %236 = vst [vmem:[#allocation3 + $0x58] sm:$0xff] %v234
    %v237 = vld [vmem:[#allocation2] sm:$0xff]
    %v238 = vld [vmem:[#allocation2 + $0x8] sm:$0xff]
    %v239 = vld [vmem:[#allocation2 + $0x10] sm:$0xff]
    %243 = vrot.lane.b32.xlu0 %v237, 1
    %v244 = vpop.permute.xlu0 %243
    %245 = vrot.lane.b32.xlu0 %v238, 1
    %v246 = vpop.permute.xlu0 %245
    %247 = vrot.lane.b32.xlu0 %v239, 1
    %v248 = vpop.permute.xlu0 %247
    %vm249 = vcmask 7168
    %v250 = vsel %vm249, %v244, %v246
    %v251 = vsel %vm249, %v246, %v248
    %v254 = vsel %vm115, %v250, 0.0
    %v255 = vsel %vm116, %v251, 0.0
    %256 = vst [vmem:[#allocation3 + $0x60] sm:$0xff] %v254
    %257 = vst [vmem:[#allocation3 + $0x68] sm:$0xff] %v255
    %v258 = vld [vmem:[%s107] sm:$0xff]
    %v259 = vld [vmem:[%s107 + $0x8] sm:$0xff]
    %v260 = vld [vmem:[%s107 + $0x10] sm:$0xff]
    %264 = vrot.lane.b32.xlu0 %v258, 1
    %v265 = vpop.permute.xlu0 %264
    %266 = vrot.lane.b32.xlu0 %v259, 1
    %v267 = vpop.permute.xlu0 %266
    %268 = vrot.lane.b32.xlu0 %v260, 1
    %v269 = vpop.permute.xlu0 %268
    %v270 = vsel %vm249, %v265, %v267
    %v271 = vsel %vm249, %v267, %v269
    %v274 = vsel %vm115, %v270, 0.0
    %v275 = vsel %vm116, %v271, 0.0
    %276 = vst [vmem:[#allocation3 + $0x70] sm:$0xff] %v274
    %277 = vst [vmem:[#allocation3 + $0x78] sm:$0xff] %v275
    %v278 = vld [vmem:[#allocation2 + $0x8] sm:$0xff]
    %v279 = vld [vmem:[#allocation2 + $0x10] sm:$0xff]
    %280 = vst [vmem:[#allocation3 + $0x80] sm:$0xff] %v278
    %281 = vst [vmem:[#allocation3 + $0x88] sm:$0xff] %v279
    %v282 = vld [vmem:[%s107 + $0x8] sm:$0xff]
    %v283 = vld [vmem:[%s107 + $0x10] sm:$0xff]
    %284 = vst [vmem:[#allocation3 + $0x90] sm:$0xff] %v282
    %285 = vst [vmem:[#allocation3 + $0x98] sm:$0xff] %v283
    %v286 = vld [vmem:[#allocation2 + $0x8] sm:$0xff]
    %v287 = vld [vmem:[#allocation2 + $0x10] sm:$0xff]
    %v288 = vld [vmem:[#allocation2 + $0x18] sm:$0xff]
    %292 = vrot.lane.b32.xlu0 %v286, 127
    %v293 = vpop.permute.xlu0 %292
    %294 = vrot.lane.b32.xlu0 %v287, 127
    %v295 = vpop.permute.xlu0 %294
    %296 = vrot.lane.b32.xlu0 %v288, 127
    %v297 = vpop.permute.xlu0 %296
    %vm298 = vcmask 1039360
    %v299 = vsel %vm298, %v293, %v295
    %v300 = vsel %vm298, %v295, %v297
    %v303 = vsel %vm197, %v299, 0.0
    %v304 = vsel %vm198, %v300, 0.0
    %305 = vst [vmem:[#allocation3 + $0xa0] sm:$0xff] %v303
    %306 = vst [vmem:[#allocation3 + $0xa8] sm:$0xff] %v304
    %v307 = vld [vmem:[%s107 + $0x8] sm:$0xff]
    %v308 = vld [vmem:[%s107 + $0x10] sm:$0xff]
    %v309 = vld [vmem:[%s107 + $0x18] sm:$0xff]
    %313 = vrot.lane.b32.xlu0 %v307, 127
    %v314 = vpop.permute.xlu0 %313
    %315 = vrot.lane.b32.xlu0 %v308, 127
    %v316 = vpop.permute.xlu0 %315
    %317 = vrot.lane.b32.xlu0 %v309, 127
    %v318 = vpop.permute.xlu0 %317
    %v319 = vsel %vm298, %v314, %v316
    %v320 = vsel %vm298, %v316, %v318
    %v323 = vsel %vm197, %v319, 0.0
    %v324 = vsel %vm198, %v320, 0.0
    %325 = vst [vmem:[#allocation3 + $0xb0] sm:$0xff] %v323
    %326 = vst [vmem:[#allocation3 + $0xb8] sm:$0xff] %v324
    %v327 = vld [vmem:[#allocation2 + $0x8] sm:$0xff]
    %v328 = vld [vmem:[#allocation2 + $0x10] sm:$0xff]
    %v329 = vld [vmem:[#allocation2 + $0x18] sm:$0xff]
    %333 = vrot.lane.b32.xlu0 %v327, 113
    %v334 = vpop.permute.xlu0 %333
    %335 = vrot.lane.b32.xlu0 %v328, 113
    %v336 = vpop.permute.xlu0 %335
    %337 = vrot.lane.b32.xlu0 %v329, 113
    %v338 = vpop.permute.xlu0 %337
    %vm339 = vcmask 924672
    %v340 = vsel %vm339, %v334, %v336
    %v341 = vsel %vm339, %v336, %v338
    %v344 = vsel %vm115, %v340, 0.0
    %v345 = vsel %vm116, %v341, 0.0
    %346 = vst [vmem:[#allocation3 + $0xc0] sm:$0xff] %v344
    %347 = vst [vmem:[#allocation3 + $0xc8] sm:$0xff] %v345
    %v348 = vld [vmem:[%s107 + $0x8] sm:$0xff]
    %v349 = vld [vmem:[%s107 + $0x10] sm:$0xff]
    %v350 = vld [vmem:[%s107 + $0x18] sm:$0xff]
    %354 = vrot.lane.b32.xlu0 %v348, 113
    %v355 = vpop.permute.xlu0 %354
    %356 = vrot.lane.b32.xlu0 %v349, 113
    %v357 = vpop.permute.xlu0 %356
    %358 = vrot.lane.b32.xlu0 %v350, 113
    %v359 = vpop.permute.xlu0 %358
    %v360 = vsel %vm339, %v355, %v357
    %v361 = vsel %vm339, %v357, %v359
    %v364 = vsel %vm115, %v360, 0.0
    %v365 = vsel %vm116, %v361, 0.0
    %366 = vst [vmem:[#allocation3 + $0xd0] sm:$0xff] %v364
    %367 = vst [vmem:[#allocation3 + $0xd8] sm:$0xff] %v365
    %v368 = vld [vmem:[#allocation2 + $0x8] sm:$0xff]
    %v369 = vld [vmem:[#allocation2 + $0x10] sm:$0xff]
    %v370 = vld [vmem:[#allocation2 + $0x18] sm:$0xff]
    %374 = vrot.lane.b32.xlu0 %v368, 112
    %v375 = vpop.permute.xlu0 %374
    %376 = vrot.lane.b32.xlu0 %v369, 112
    %v377 = vpop.permute.xlu0 %376
    %378 = vrot.lane.b32.xlu0 %v370, 112
    %v379 = vpop.permute.xlu0 %378
    %vm380 = vcmask 916480
    %v381 = vsel %vm380, %v375, %v377
    %v382 = vsel %vm380, %v377, %v379
    %385 = vst [vmem:[#allocation3 + $0xe0] sm:$0xff] %v381
    %386 = vst [vmem:[#allocation3 + $0xe8] sm:$0xff] %v382
    %v387 = vld [vmem:[%s107 + $0x8] sm:$0xff]
    %v388 = vld [vmem:[%s107 + $0x10] sm:$0xff]
    %v389 = vld [vmem:[%s107 + $0x18] sm:$0xff]
    %393 = vrot.lane.b32.xlu0 %v387, 112
    %v394 = vpop.permute.xlu0 %393
    %395 = vrot.lane.b32.xlu0 %v388, 112
    %v396 = vpop.permute.xlu0 %395
    %397 = vrot.lane.b32.xlu0 %v389, 112
    %v398 = vpop.permute.xlu0 %397
    %v399 = vsel %vm380, %v394, %v396
    %v400 = vsel %vm380, %v396, %v398
    %403 = vst [vmem:[#allocation3 + $0xf0] sm:$0xff] %v399
    %404 = vst [vmem:[#allocation3 + $0xf8] sm:$0xff] %v400
    %v405 = vld [vmem:[#allocation2 + $0x8] sm:$0xff]
    %v406 = vld [vmem:[#allocation2 + $0x10] sm:$0xff]
    %v407 = vld [vmem:[#allocation2 + $0x18] sm:$0xff]
    %411 = vrot.lane.b32.xlu0 %v405, 111
    %v412 = vpop.permute.xlu0 %411
    %413 = vrot.lane.b32.xlu0 %v406, 111
    %v414 = vpop.permute.xlu0 %413
    %415 = vrot.lane.b32.xlu0 %v407, 111
    %v416 = vpop.permute.xlu0 %415
    %vm417 = vcmask 908288
    %v418 = vsel %vm417, %v412, %v414
    %v419 = vsel %vm417, %v414, %v416
    %v422 = vsel %vm197, %v418, 0.0
    %v423 = vsel %vm198, %v419, 0.0
    %424 = vst [vmem:[#allocation3 + $0x100] sm:$0xff] %v422
    %425 = vst [vmem:[#allocation3 + $0x108] sm:$0xff] %v423
    %v426 = vld [vmem:[%s107 + $0x8] sm:$0xff]
    %v427 = vld [vmem:[%s107 + $0x10] sm:$0xff]
    %v428 = vld [vmem:[%s107 + $0x18] sm:$0xff]
    %432 = vrot.lane.b32.xlu0 %v426, 111
    %v433 = vpop.permute.xlu0 %432
    %434 = vrot.lane.b32.xlu0 %v427, 111
    %v435 = vpop.permute.xlu0 %434
    %436 = vrot.lane.b32.xlu0 %v428, 111
    %v437 = vpop.permute.xlu0 %436
    %v438 = vsel %vm417, %v433, %v435
    %v439 = vsel %vm417, %v435, %v437
    %v442 = vsel %vm197, %v438, 0.0
    %v443 = vsel %vm198, %v439, 0.0
    %444 = vst [vmem:[#allocation3 + $0x110] sm:$0xff] %v442
    %445 = vst [vmem:[#allocation3 + $0x118] sm:$0xff] %v443
    %v446 = vld [vmem:[#allocation6] sm:$0xff]
    %v447 = vld [vmem:[#allocation3] sm:$0xff]
    %v448 = vld [vmem:[#allocation3 + $0x8] sm:$0xff]
    %v449 = vld [vmem:[#allocation3 + $0x10] sm:$0xff]
    %v450 = vld [vmem:[#allocation3 + $0x18] sm:$0xff]
    %v451 = vld [vmem:[#allocation3 + $0x20] sm:$0xff]
    %v452 = vld [vmem:[#allocation3 + $0x28] sm:$0xff]
    %v453 = vld [vmem:[#allocation3 + $0x30] sm:$0xff]
    %v454 = vld [vmem:[#allocation3 + $0x38] sm:$0xff]
    %v455 = vld [vmem:[#allocation3 + $0x40] sm:$0xff]
    %v456 = vld [vmem:[#allocation3 + $0x48] sm:$0xff]
    %v457 = vld [vmem:[#allocation3 + $0x50] sm:$0xff]
    %v458 = vld [vmem:[#allocation3 + $0x58] sm:$0xff]
    %v459 = vld [vmem:[#allocation3 + $0x60] sm:$0xff]
    %v460 = vld [vmem:[#allocation3 + $0x68] sm:$0xff]
    %v461 = vld [vmem:[#allocation3 + $0x70] sm:$0xff]
    %v462 = vld [vmem:[#allocation3 + $0x78] sm:$0xff]
    %v463 = vld [vmem:[#allocation3 + $0x80] sm:$0xff]
    %v464 = vld [vmem:[#allocation3 + $0x88] sm:$0xff]
    %v465 = vld [vmem:[#allocation3 + $0x90] sm:$0xff]
    %v466 = vld [vmem:[#allocation3 + $0x98] sm:$0xff]
    %v467 = vld [vmem:[#allocation3 + $0xa0] sm:$0xff]
    %v468 = vld [vmem:[#allocation3 + $0xa8] sm:$0xff]
    %v469 = vld [vmem:[#allocation3 + $0xb0] sm:$0xff]
    %v470 = vld [vmem:[#allocation3 + $0xb8] sm:$0xff]
    %v471 = vld [vmem:[#allocation3 + $0xc0] sm:$0xff]
    %v472 = vld [vmem:[#allocation3 + $0xc8] sm:$0xff]
    %v473 = vld [vmem:[#allocation3 + $0xd0] sm:$0xff]
    %v474 = vld [vmem:[#allocation3 + $0xd8] sm:$0xff]
    %v475 = vld [vmem:[#allocation3 + $0xe0] sm:$0xff]
    %v476 = vld [vmem:[#allocation3 + $0xe8] sm:$0xff]
    %v477 = vld [vmem:[#allocation3 + $0xf0] sm:$0xff]
    %v478 = vld [vmem:[#allocation3 + $0xf8] sm:$0xff]
    %v479 = vld [vmem:[#allocation3 + $0x100] sm:$0xff]
    %v480 = vld [vmem:[#allocation3 + $0x108] sm:$0xff]
    %v481 = vld [vmem:[#allocation3 + $0x110] sm:$0xff]
    %v482 = vld [vmem:[#allocation3 + $0x118] sm:$0xff]
    %v483 = vld [vmem:[%s2] sm:$0xff]
    %485 = vset.pattern.permute.xlu0 0
    %486 = vperm.xlu0 %485, %v483
    %v487 = vpop.permute.xlu0 %486
    %vm489 = vcmask 588800
    %v491 = vsel %vm489, %v446, 0
    %493 = vmatprep.subr.mxu0 %v448
    %494 = vmatpush1.msra.mxu0 %v447
    %495 = vmatprep.subr.mxu0 %v452
    %496 = vmatpush1.msra.mxu0 %v451
    %497 = vmatprep.subr.mxu0 %v456
    %498 = vmatpush1.msra.mxu0 %v455
    %499 = vmatprep.subr.mxu0 %v460
    %500 = vmatpush1.msra.mxu0 %v459
    %501 = vmatprep.subr.mxu0 %v464
    %502 = vmatpush1.msra.mxu0 %v463
    %503 = vmatprep.subr.mxu0 %v468
    %504 = vmatpush1.msra.mxu0 %v467
    %505 = vmatprep.subr.mxu0 %v472
    %506 = vmatpush1.msra.mxu0 %v471
    %507 = vmatprep.subr.mxu0 %v476
    %508 = vmatpush1.msra.mxu0 %v475
    %509 = vmatprep.subr.mxu0 %v480
    %510 = vmatpush1.msra.mxu0 %v479
    %511 = vmatprep.subr.mxu0 0.0
    %512 = vmatpush1.msra.mxu0 0.0
    %513 = vmatprep.subr.mxu0 0.0
    %514 = vmatpush1.msra.mxu0 0.0
    %515 = vmatprep.subr.mxu0 0.0
    %516 = vmatpush1.msra.mxu0 0.0
    %517 = vmatprep.subr.mxu0 0.0
    %518 = vmatpush1.msra.mxu0 0.0
    %519 = vmatprep.subr.mxu0 0.0
    %520 = vmatpush1.msra.mxu0 0.0
    %521 = vmatprep.subr.mxu0 0.0
    %522 = vmatpush1.msra.mxu0 0.0
    %523 = vmatprep.subr.mxu0 0.0
    %524 = vmatpush1.msra.mxu0 0.0
    %525 = vmatprep.subr.mxu0 0.0
    %526 = vmatpush1.msra.mxu0 0.0
    %527 = vmatprep.subr.mxu0 0.0
    %528 = vmatpush1.msra.mxu0 0.0
    %529 = vmatprep.subr.mxu0 0.0
    %530 = vmatpush1.msra.mxu0 0.0
    %531 = vmatprep.subr.mxu0 0.0
    %532 = vmatpush1.msra.mxu0 0.0
    %533 = vmatprep.subr.mxu0 0.0
    %534 = vmatpush1.msra.mxu0 0.0
    %535 = vmatprep.subr.mxu0 0.0
    %536 = vmatpush1.msra.mxu0 0.0
    %537 = vmatprep.subr.mxu0 0.0
    %538 = vmatpush1.msra.mxu0 0.0
    %539 = vmatprep.subr.mxu0 0.0
    %540 = vmatpush1.msra.mxu0 0.0
    %541 = vmatprep.subr.mxu0 0.0
    %542 = vmatpush1.msra.mxu0 0.0
    %543 = vmatprep.subr.mxu0 0.0
    %544 = vmatpush1.msra.mxu0 0.0
    %545 = vmatprep.subr.mxu0 0.0
    %546 = vmatpush1.msra.mxu0 0.0
    %547 = vmatprep.subr.mxu0 0.0
    %548 = vmatpush1.msra.mxu0 0.0
    %549 = vmatprep.subr.mxu0 0.0
    %550 = vmatpush1.msra.mxu0 0.0
    %551 = vmatprep.subr.mxu0 0.0
    %552 = vmatpush1.msra.mxu0 0.0
    %553 = vmatprep.subr.mxu0 0.0
    %554 = vmatpush1.msra.mxu0 0.0
    %555 = vmatprep.subr.mxu0 0.0
    %556 = vmatpush1.msra.mxu0 0.0
    %557 = vmatprep.mubr.f32.mxu0 0.0
    %558 = vmatmul.mubr.f32.gmra.mrb[0].mxu0 %v491
    %v559 = vpop.f32.mrb[0].mxu0
    %v560 = vadd.f32 %v487, %v559
    %v561 = vpop.f32.mrb[0].mxu0
    %v562 = vadd.f32 %v487, %v561
    %563 = vdwg.mxu0
    %564 = vmatprep.subr.mxu0 %v450
    %565 = vmatpush1.msra.mxu0 %v449
    %566 = vmatprep.subr.mxu0 %v454
    %567 = vmatpush1.msra.mxu0 %v453
    %568 = vmatprep.subr.mxu0 %v458
    %569 = vmatpush1.msra.mxu0 %v457
    %570 = vmatprep.subr.mxu0 %v462
    %571 = vmatpush1.msra.mxu0 %v461
    %572 = vmatprep.subr.mxu0 %v466
    %573 = vmatpush1.msra.mxu0 %v465
    %574 = vmatprep.subr.mxu0 %v470
    %575 = vmatpush1.msra.mxu0 %v469
    %576 = vmatprep.subr.mxu0 %v474
    %577 = vmatpush1.msra.mxu0 %v473
    %578 = vmatprep.subr.mxu0 %v478
    %579 = vmatpush1.msra.mxu0 %v477
    %580 = vmatprep.subr.mxu0 %v482
    %581 = vmatpush1.msra.mxu0 %v481
    %582 = vmatprep.subr.mxu0 0.0
    %583 = vmatpush1.msra.mxu0 0.0
    %584 = vmatprep.subr.mxu0 0.0
    %585 = vmatpush1.msra.mxu0 0.0
    %586 = vmatprep.subr.mxu0 0.0
    %587 = vmatpush1.msra.mxu0 0.0
    %588 = vmatprep.subr.mxu0 0.0
    %589 = vmatpush1.msra.mxu0 0.0
    %590 = vmatprep.subr.mxu0 0.0
    %591 = vmatpush1.msra.mxu0 0.0
    %592 = vmatprep.subr.mxu0 0.0
    %593 = vmatpush1.msra.mxu0 0.0
    %594 = vmatprep.subr.mxu0 0.0
    %595 = vmatpush1.msra.mxu0 0.0
    %596 = vmatprep.subr.mxu0 0.0
    %597 = vmatpush1.msra.mxu0 0.0
    %598 = vmatprep.subr.mxu0 0.0
    %599 = vmatpush1.msra.mxu0 0.0
    %600 = vmatprep.subr.mxu0 0.0
    %601 = vmatpush1.msra.mxu0 0.0
    %602 = vmatprep.subr.mxu0 0.0
    %603 = vmatpush1.msra.mxu0 0.0
    %604 = vmatprep.subr.mxu0 0.0
    %605 = vmatpush1.msra.mxu0 0.0
    %606 = vmatprep.subr.mxu0 0.0
    %607 = vmatpush1.msra.mxu0 0.0
    %608 = vmatprep.subr.mxu0 0.0
    %609 = vmatpush1.msra.mxu0 0.0
    %610 = vmatprep.subr.mxu0 0.0
    %611 = vmatpush1.msra.mxu0 0.0
    %612 = vmatprep.subr.mxu0 0.0
    %613 = vmatpush1.msra.mxu0 0.0
    %614 = vmatprep.subr.mxu0 0.0
    %615 = vmatpush1.msra.mxu0 0.0
    %616 = vmatprep.subr.mxu0 0.0
    %617 = vmatpush1.msra.mxu0 0.0
    %618 = vmatprep.subr.mxu0 0.0
    %619 = vmatpush1.msra.mxu0 0.0
    %620 = vmatprep.subr.mxu0 0.0
    %621 = vmatpush1.msra.mxu0 0.0
    %622 = vmatprep.subr.mxu0 0.0
    %623 = vmatpush1.msra.mxu0 0.0
    %624 = vmatprep.subr.mxu0 0.0
    %625 = vmatpush1.msra.mxu0 0.0
    %626 = vmatprep.subr.mxu0 0.0
    %627 = vmatpush1.msra.mxu0 0.0
    %628 = vmatprep.mubr.f32.mxu0 0.0
    %629 = vmatmul.mubr.f32.gmra.mrb[0].mxu0 %v491
    %v630 = vpop.f32.mrb[0].mxu0
    %v631 = vadd.f32 %v487, %v630
    %v632 = vpop.f32.mrb[0].mxu0
    %v633 = vadd.f32 %v487, %v632
    %634 = vdwg.mxu0
    %vm635 = vcmp.gt.f32.partialorder %v560, 0.0
    %vm636 = vcmp.gt.f32.partialorder %v562, 0.0
    %vm637 = vcmp.gt.f32.partialorder %v631, 0.0
    %vm638 = vcmp.gt.f32.partialorder %v633, 0.0
    %v639 = vmul.f32 %v560, 0.01
    %v640 = vmul.f32 %v562, 0.01
    %v641 = vmul.f32 %v631, 0.01
    %v642 = vmul.f32 %v633, 0.01
    %v643 = vsel %vm635, %v560, %v639
    %v644 = vsel %vm636, %v562, %v640
    %v645 = vsel %vm637, %v631, %v641
    %v646 = vsel %vm638, %v633, %v642
    %647 = vst [vmem:[#allocation4 + $0x8] sm:$0xff] %v643
    %648 = vst [vmem:[#allocation4 + $0x10] sm:$0xff] %v644
    %s649 = scalar_lea.vmem [#allocation4], 32
    %650 = vst [vmem:[%s649 + $0x8] sm:$0xff] %v645
    %651 = vst [vmem:[%s649 + $0x10] sm:$0xff] %v646
    %v652 = vld [vmem:[#allocation4] sm:$0xff]
    %v653 = vld [vmem:[#allocation4 + $0x8] sm:$0xff]
    %v654 = vld [vmem:[#allocation4 + $0x10] sm:$0xff]
    %658 = vrot.lane.b32.xlu0 %v652, 17
    %v659 = vpop.permute.xlu0 %658
    %660 = vrot.lane.b32.xlu0 %v653, 17
    %v661 = vpop.permute.xlu0 %660
    %662 = vrot.lane.b32.xlu0 %v654, 17
    %v663 = vpop.permute.xlu0 %662
    %v664 = vsel %vm126, %v659, %v661
    %v665 = vsel %vm126, %v661, %v663
    %v668 = vsel %vm115, %v664, 0.0
    %v669 = vsel %vm116, %v665, 0.0
    %670 = vst [vmem:[#allocation5] sm:$0xff] %v668
    %671 = vst [vmem:[#allocation5 + $0x8] sm:$0xff] %v669
    %v672 = vld [vmem:[%s649] sm:$0xff]
    %v673 = vld [vmem:[%s649 + $0x8] sm:$0xff]
    %v674 = vld [vmem:[%s649 + $0x10] sm:$0xff]
    %678 = vrot.lane.b32.xlu0 %v672, 17
    %v679 = vpop.permute.xlu0 %678
    %680 = vrot.lane.b32.xlu0 %v673, 17
    %v681 = vpop.permute.xlu0 %680
    %682 = vrot.lane.b32.xlu0 %v674, 17
    %v683 = vpop.permute.xlu0 %682
    %v684 = vsel %vm126, %v679, %v681
    %v685 = vsel %vm126, %v681, %v683
    %v688 = vsel %vm115, %v684, 0.0
    %v689 = vsel %vm116, %v685, 0.0
    %690 = vst [vmem:[#allocation5 + $0x10] sm:$0xff] %v688
    %691 = vst [vmem:[#allocation5 + $0x18] sm:$0xff] %v689
    %v692 = vld [vmem:[#allocation4] sm:$0xff]
    %v693 = vld [vmem:[#allocation4 + $0x8] sm:$0xff]
    %v694 = vld [vmem:[#allocation4 + $0x10] sm:$0xff]
    %698 = vrot.lane.b32.xlu0 %v692, 16
    %v699 = vpop.permute.xlu0 %698
    %700 = vrot.lane.b32.xlu0 %v693, 16
    %v701 = vpop.permute.xlu0 %700
    %702 = vrot.lane.b32.xlu0 %v694, 16
    %v703 = vpop.permute.xlu0 %702
    %v704 = vsel %vm167, %v699, %v701
    %v705 = vsel %vm167, %v701, %v703
    %708 = vst [vmem:[#allocation5 + $0x20] sm:$0xff] %v704
    %709 = vst [vmem:[#allocation5 + $0x28] sm:$0xff] %v705
    %v710 = vld [vmem:[%s649] sm:$0xff]
    %v711 = vld [vmem:[%s649 + $0x8] sm:$0xff]
    %v712 = vld [vmem:[%s649 + $0x10] sm:$0xff]
    %716 = vrot.lane.b32.xlu0 %v710, 16
    %v717 = vpop.permute.xlu0 %716
    %718 = vrot.lane.b32.xlu0 %v711, 16
    %v719 = vpop.permute.xlu0 %718
    %720 = vrot.lane.b32.xlu0 %v712, 16
    %v721 = vpop.permute.xlu0 %720
    %v722 = vsel %vm167, %v717, %v719
    %v723 = vsel %vm167, %v719, %v721
    %726 = vst [vmem:[#allocation5 + $0x30] sm:$0xff] %v722
    %727 = vst [vmem:[#allocation5 + $0x38] sm:$0xff] %v723
    %v728 = vld [vmem:[#allocation4] sm:$0xff]
    %v729 = vld [vmem:[#allocation4 + $0x8] sm:$0xff]
    %v730 = vld [vmem:[#allocation4 + $0x10] sm:$0xff]
    %734 = vrot.lane.b32.xlu0 %v728, 15
    %v735 = vpop.permute.xlu0 %734
    %736 = vrot.lane.b32.xlu0 %v729, 15
    %v737 = vpop.permute.xlu0 %736
    %738 = vrot.lane.b32.xlu0 %v730, 15
    %v739 = vpop.permute.xlu0 %738
    %v740 = vsel %vm208, %v735, %v737
    %v741 = vsel %vm208, %v737, %v739
    %v744 = vsel %vm197, %v740, 0.0
    %v745 = vsel %vm198, %v741, 0.0
    %746 = vst [vmem:[#allocation5 + $0x40] sm:$0xff] %v744
    %747 = vst [vmem:[#allocation5 + $0x48] sm:$0xff] %v745
    %v748 = vld [vmem:[%s649] sm:$0xff]
    %v749 = vld [vmem:[%s649 + $0x8] sm:$0xff]
    %v750 = vld [vmem:[%s649 + $0x10] sm:$0xff]
    %754 = vrot.lane.b32.xlu0 %v748, 15
    %v755 = vpop.permute.xlu0 %754
    %756 = vrot.lane.b32.xlu0 %v749, 15
    %v757 = vpop.permute.xlu0 %756
    %758 = vrot.lane.b32.xlu0 %v750, 15
    %v759 = vpop.permute.xlu0 %758
    %v760 = vsel %vm208, %v755, %v757
    %v761 = vsel %vm208, %v757, %v759
    %v764 = vsel %vm197, %v760, 0.0
    %v765 = vsel %vm198, %v761, 0.0
    %766 = vst [vmem:[#allocation5 + $0x50] sm:$0xff] %v764
    %767 = vst [vmem:[#allocation5 + $0x58] sm:$0xff] %v765
    %v768 = vld [vmem:[#allocation4] sm:$0xff]
    %v769 = vld [vmem:[#allocation4 + $0x8] sm:$0xff]
    %v770 = vld [vmem:[#allocation4 + $0x10] sm:$0xff]
    %774 = vrot.lane.b32.xlu0 %v768, 1
    %v775 = vpop.permute.xlu0 %774
    %776 = vrot.lane.b32.xlu0 %v769, 1
    %v777 = vpop.permute.xlu0 %776
    %778 = vrot.lane.b32.xlu0 %v770, 1
    %v779 = vpop.permute.xlu0 %778
    %v780 = vsel %vm249, %v775, %v777
    %v781 = vsel %vm249, %v777, %v779
    %v784 = vsel %vm115, %v780, 0.0
    %v785 = vsel %vm116, %v781, 0.0
    %786 = vst [vmem:[#allocation5 + $0x60] sm:$0xff] %v784
    %787 = vst [vmem:[#allocation5 + $0x68] sm:$0xff] %v785
    %v788 = vld [vmem:[%s649] sm:$0xff]
    %v789 = vld [vmem:[%s649 + $0x8] sm:$0xff]
    %v790 = vld [vmem:[%s649 + $0x10] sm:$0xff]
    %794 = vrot.lane.b32.xlu0 %v788, 1
    %v795 = vpop.permute.xlu0 %794
    %796 = vrot.lane.b32.xlu0 %v789, 1
    %v797 = vpop.permute.xlu0 %796
    %798 = vrot.lane.b32.xlu0 %v790, 1
    %v799 = vpop.permute.xlu0 %798
    %v800 = vsel %vm249, %v795, %v797
    %v801 = vsel %vm249, %v797, %v799
    %v804 = vsel %vm115, %v800, 0.0
    %v805 = vsel %vm116, %v801, 0.0
    %806 = vst [vmem:[#allocation5 + $0x70] sm:$0xff] %v804
    %807 = vst [vmem:[#allocation5 + $0x78] sm:$0xff] %v805
    %v808 = vld [vmem:[#allocation4 + $0x8] sm:$0xff]
    %v809 = vld [vmem:[#allocation4 + $0x10] sm:$0xff]
    %810 = vst [vmem:[#allocation5 + $0x80] sm:$0xff] %v808
    %811 = vst [vmem:[#allocation5 + $0x88] sm:$0xff] %v809
    %v812 = vld [vmem:[%s649 + $0x8] sm:$0xff]
    %v813 = vld [vmem:[%s649 + $0x10] sm:$0xff]
    %814 = vst [vmem:[#allocation5 + $0x90] sm:$0xff] %v812
    %815 = vst [vmem:[#allocation5 + $0x98] sm:$0xff] %v813
    %v816 = vld [vmem:[#allocation4 + $0x8] sm:$0xff]
    %v817 = vld [vmem:[#allocation4 + $0x10] sm:$0xff]
    %v818 = vld [vmem:[#allocation4 + $0x18] sm:$0xff]
    %822 = vrot.lane.b32.xlu0 %v816, 127
    %v823 = vpop.permute.xlu0 %822
    %824 = vrot.lane.b32.xlu0 %v817, 127
    %v825 = vpop.permute.xlu0 %824
    %826 = vrot.lane.b32.xlu0 %v818, 127
    %v827 = vpop.permute.xlu0 %826
    %v828 = vsel %vm298, %v823, %v825
    %v829 = vsel %vm298, %v825, %v827
    %v832 = vsel %vm197, %v828, 0.0
    %v833 = vsel %vm198, %v829, 0.0
    %834 = vst [vmem:[#allocation5 + $0xa0] sm:$0xff] %v832
    %835 = vst [vmem:[#allocation5 + $0xa8] sm:$0xff] %v833
    %v836 = vld [vmem:[%s649 + $0x8] sm:$0xff]
    %v837 = vld [vmem:[%s649 + $0x10] sm:$0xff]
    %v838 = vld [vmem:[%s649 + $0x18] sm:$0xff]
    %842 = vrot.lane.b32.xlu0 %v836, 127
    %v843 = vpop.permute.xlu0 %842
    %844 = vrot.lane.b32.xlu0 %v837, 127
    %v845 = vpop.permute.xlu0 %844
    %846 = vrot.lane.b32.xlu0 %v838, 127
    %v847 = vpop.permute.xlu0 %846
    %v848 = vsel %vm298, %v843, %v845
    %v849 = vsel %vm298, %v845, %v847
    %v852 = vsel %vm197, %v848, 0.0
    %v853 = vsel %vm198, %v849, 0.0
    %854 = vst [vmem:[#allocation5 + $0xb0] sm:$0xff] %v852
    %855 = vst [vmem:[#allocation5 + $0xb8] sm:$0xff] %v853
    %v856 = vld [vmem:[#allocation4 + $0x8] sm:$0xff]
    %v857 = vld [vmem:[#allocation4 + $0x10] sm:$0xff]
    %v858 = vld [vmem:[#allocation4 + $0x18] sm:$0xff]
    %862 = vrot.lane.b32.xlu0 %v856, 113
    %v863 = vpop.permute.xlu0 %862
    %864 = vrot.lane.b32.xlu0 %v857, 113
    %v865 = vpop.permute.xlu0 %864
    %866 = vrot.lane.b32.xlu0 %v858, 113
    %v867 = vpop.permute.xlu0 %866
    %v868 = vsel %vm339, %v863, %v865
    %v869 = vsel %vm339, %v865, %v867
    %v872 = vsel %vm115, %v868, 0.0
    %v873 = vsel %vm116, %v869, 0.0
    %874 = vst [vmem:[#allocation5 + $0xc0] sm:$0xff] %v872
    %875 = vst [vmem:[#allocation5 + $0xc8] sm:$0xff] %v873
    %v876 = vld [vmem:[%s649 + $0x8] sm:$0xff]
    %v877 = vld [vmem:[%s649 + $0x10] sm:$0xff]
    %v878 = vld [vmem:[%s649 + $0x18] sm:$0xff]
    %882 = vrot.lane.b32.xlu0 %v876, 113
    %v883 = vpop.permute.xlu0 %882
    %884 = vrot.lane.b32.xlu0 %v877, 113
    %v885 = vpop.permute.xlu0 %884
    %886 = vrot.lane.b32.xlu0 %v878, 113
    %v887 = vpop.permute.xlu0 %886
    %v888 = vsel %vm339, %v883, %v885
    %v889 = vsel %vm339, %v885, %v887
    %v892 = vsel %vm115, %v888, 0.0
    %v893 = vsel %vm116, %v889, 0.0
    %894 = vst [vmem:[#allocation5 + $0xd0] sm:$0xff] %v892
    %895 = vst [vmem:[#allocation5 + $0xd8] sm:$0xff] %v893
    %v896 = vld [vmem:[#allocation4 + $0x8] sm:$0xff]
    %v897 = vld [vmem:[#allocation4 + $0x10] sm:$0xff]
    %v898 = vld [vmem:[#allocation4 + $0x18] sm:$0xff]
    %902 = vrot.lane.b32.xlu0 %v896, 112
    %v903 = vpop.permute.xlu0 %902
    %904 = vrot.lane.b32.xlu0 %v897, 112
    %v905 = vpop.permute.xlu0 %904
    %906 = vrot.lane.b32.xlu0 %v898, 112
    %v907 = vpop.permute.xlu0 %906
    %v908 = vsel %vm380, %v903, %v905
    %v909 = vsel %vm380, %v905, %v907
    %912 = vst [vmem:[#allocation5 + $0xe0] sm:$0xff] %v908
    %913 = vst [vmem:[#allocation5 + $0xe8] sm:$0xff] %v909
    %v914 = vld [vmem:[%s649 + $0x8] sm:$0xff]
    %v915 = vld [vmem:[%s649 + $0x10] sm:$0xff]
    %v916 = vld [vmem:[%s649 + $0x18] sm:$0xff]
    %920 = vrot.lane.b32.xlu0 %v914, 112
    %v921 = vpop.permute.xlu0 %920
    %922 = vrot.lane.b32.xlu0 %v915, 112
    %v923 = vpop.permute.xlu0 %922
    %924 = vrot.lane.b32.xlu0 %v916, 112
    %v925 = vpop.permute.xlu0 %924
    %v926 = vsel %vm380, %v921, %v923
    %v927 = vsel %vm380, %v923, %v925
    %930 = vst [vmem:[#allocation5 + $0xf0] sm:$0xff] %v926
    %931 = vst [vmem:[#allocation5 + $0xf8] sm:$0xff] %v927
    %v932 = vld [vmem:[#allocation4 + $0x8] sm:$0xff]
    %v933 = vld [vmem:[#allocation4 + $0x10] sm:$0xff]
    %v934 = vld [vmem:[#allocation4 + $0x18] sm:$0xff]
    %938 = vrot.lane.b32.xlu0 %v932, 111
    %v939 = vpop.permute.xlu0 %938
    %940 = vrot.lane.b32.xlu0 %v933, 111
    %v941 = vpop.permute.xlu0 %940
    %942 = vrot.lane.b32.xlu0 %v934, 111
    %v943 = vpop.permute.xlu0 %942
    %v944 = vsel %vm417, %v939, %v941
    %v945 = vsel %vm417, %v941, %v943
    %v948 = vsel %vm197, %v944, 0.0
    %v949 = vsel %vm198, %v945, 0.0
    %950 = vst [vmem:[#allocation5 + $0x100] sm:$0xff] %v948
    %951 = vst [vmem:[#allocation5 + $0x108] sm:$0xff] %v949
    %v952 = vld [vmem:[%s649 + $0x8] sm:$0xff]
    %v953 = vld [vmem:[%s649 + $0x10] sm:$0xff]
    %v954 = vld [vmem:[%s649 + $0x18] sm:$0xff]
    %958 = vrot.lane.b32.xlu0 %v952, 111
    %v959 = vpop.permute.xlu0 %958
    %960 = vrot.lane.b32.xlu0 %v953, 111
    %v961 = vpop.permute.xlu0 %960
    %962 = vrot.lane.b32.xlu0 %v954, 111
    %v963 = vpop.permute.xlu0 %962
    %v964 = vsel %vm417, %v959, %v961
    %v965 = vsel %vm417, %v961, %v963
    %v968 = vsel %vm197, %v964, 0.0
    %v969 = vsel %vm198, %v965, 0.0
    %970 = vst [vmem:[#allocation5 + $0x110] sm:$0xff] %v968
    %971 = vst [vmem:[#allocation5 + $0x118] sm:$0xff] %v969
    %v972 = vld [vmem:[%s3] sm:$0xff]
    %v973 = vld [vmem:[#allocation5] sm:$0xff]
    %v974 = vld [vmem:[#allocation5 + $0x8] sm:$0xff]
    %v975 = vld [vmem:[#allocation5 + $0x10] sm:$0xff]
    %v976 = vld [vmem:[#allocation5 + $0x18] sm:$0xff]
    %v977 = vld [vmem:[#allocation5 + $0x20] sm:$0xff]
    %v978 = vld [vmem:[#allocation5 + $0x28] sm:$0xff]
    %v979 = vld [vmem:[#allocation5 + $0x30] sm:$0xff]
    %v980 = vld [vmem:[#allocation5 + $0x38] sm:$0xff]
    %v981 = vld [vmem:[#allocation5 + $0x40] sm:$0xff]
    %v982 = vld [vmem:[#allocation5 + $0x48] sm:$0xff]
    %v983 = vld [vmem:[#allocation5 + $0x50] sm:$0xff]
    %v984 = vld [vmem:[#allocation5 + $0x58] sm:$0xff]
    %v985 = vld [vmem:[#allocation5 + $0x60] sm:$0xff]
    %v986 = vld [vmem:[#allocation5 + $0x68] sm:$0xff]
    %v987 = vld [vmem:[#allocation5 + $0x70] sm:$0xff]
    %v988 = vld [vmem:[#allocation5 + $0x78] sm:$0xff]
    %v989 = vld [vmem:[#allocation5 + $0x80] sm:$0xff]
    %v990 = vld [vmem:[#allocation5 + $0x88] sm:$0xff]
    %v991 = vld [vmem:[#allocation5 + $0x90] sm:$0xff]
    %v992 = vld [vmem:[#allocation5 + $0x98] sm:$0xff]
    %v993 = vld [vmem:[#allocation5 + $0xa0] sm:$0xff]
    %v994 = vld [vmem:[#allocation5 + $0xa8] sm:$0xff]
    %v995 = vld [vmem:[#allocation5 + $0xb0] sm:$0xff]
    %v996 = vld [vmem:[#allocation5 + $0xb8] sm:$0xff]
    %v997 = vld [vmem:[#allocation5 + $0xc0] sm:$0xff]
    %v998 = vld [vmem:[#allocation5 + $0xc8] sm:$0xff]
    %v999 = vld [vmem:[#allocation5 + $0xd0] sm:$0xff]
    %v1000 = vld [vmem:[#allocation5 + $0xd8] sm:$0xff]
    %v1001 = vld [vmem:[#allocation5 + $0xe0] sm:$0xff]
    %v1002 = vld [vmem:[#allocation5 + $0xe8] sm:$0xff]
    %v1003 = vld [vmem:[#allocation5 + $0xf0] sm:$0xff]
    %v1004 = vld [vmem:[#allocation5 + $0xf8] sm:$0xff]
    %v1005 = vld [vmem:[#allocation5 + $0x100] sm:$0xff]
    %v1006 = vld [vmem:[#allocation5 + $0x108] sm:$0xff]
    %v1007 = vld [vmem:[#allocation5 + $0x110] sm:$0xff]
    %v1008 = vld [vmem:[#allocation5 + $0x118] sm:$0xff]
    %v1009 = vld [vmem:[%s4] sm:$0xff]
    %1011 = vset.pattern.permute.xlu0 0
    %1012 = vperm.xlu0 %1011, %v1009
    %v1013 = vpop.permute.xlu0 %1012
    %v1016 = vsel %vm489, %v972, 0
    %1018 = vmatprep.subr.mxu0 %v974
    %1019 = vmatpush1.msra.mxu0 %v973
    %1020 = vmatprep.subr.mxu0 %v978
    %1021 = vmatpush1.msra.mxu0 %v977
    %1022 = vmatprep.subr.mxu0 %v982
    %1023 = vmatpush1.msra.mxu0 %v981
    %1024 = vmatprep.subr.mxu0 %v986
    %1025 = vmatpush1.msra.mxu0 %v985
    %1026 = vmatprep.subr.mxu0 %v990
    %1027 = vmatpush1.msra.mxu0 %v989
    %1028 = vmatprep.subr.mxu0 %v994
    %1029 = vmatpush1.msra.mxu0 %v993
    %1030 = vmatprep.subr.mxu0 %v998
    %1031 = vmatpush1.msra.mxu0 %v997
    %1032 = vmatprep.subr.mxu0 %v1002
    %1033 = vmatpush1.msra.mxu0 %v1001
    %1034 = vmatprep.subr.mxu0 %v1006
    %1035 = vmatpush1.msra.mxu0 %v1005
    %1036 = vmatprep.subr.mxu0 0.0
    %1037 = vmatpush1.msra.mxu0 0.0
    %1038 = vmatprep.subr.mxu0 0.0
    %1039 = vmatpush1.msra.mxu0 0.0
    %1040 = vmatprep.subr.mxu0 0.0
    %1041 = vmatpush1.msra.mxu0 0.0
    %1042 = vmatprep.subr.mxu0 0.0
    %1043 = vmatpush1.msra.mxu0 0.0
    %1044 = vmatprep.subr.mxu0 0.0
    %1045 = vmatpush1.msra.mxu0 0.0
    %1046 = vmatprep.subr.mxu0 0.0
    %1047 = vmatpush1.msra.mxu0 0.0
    %1048 = vmatprep.subr.mxu0 0.0
    %1049 = vmatpush1.msra.mxu0 0.0
    %1050 = vmatprep.subr.mxu0 0.0
    %1051 = vmatpush1.msra.mxu0 0.0
    %1052 = vmatprep.subr.mxu0 0.0
    %1053 = vmatpush1.msra.mxu0 0.0
    %1054 = vmatprep.subr.mxu0 0.0
    %1055 = vmatpush1.msra.mxu0 0.0
    %1056 = vmatprep.subr.mxu0 0.0
    %1057 = vmatpush1.msra.mxu0 0.0
    %1058 = vmatprep.subr.mxu0 0.0
    %1059 = vmatpush1.msra.mxu0 0.0
    %1060 = vmatprep.subr.mxu0 0.0
    %1061 = vmatpush1.msra.mxu0 0.0
    %1062 = vmatprep.subr.mxu0 0.0
    %1063 = vmatpush1.msra.mxu0 0.0
    %1064 = vmatprep.subr.mxu0 0.0
    %1065 = vmatpush1.msra.mxu0 0.0
    %1066 = vmatprep.subr.mxu0 0.0
    %1067 = vmatpush1.msra.mxu0 0.0
    %1068 = vmatprep.subr.mxu0 0.0
    %1069 = vmatpush1.msra.mxu0 0.0
    %1070 = vmatprep.subr.mxu0 0.0
    %1071 = vmatpush1.msra.mxu0 0.0
    %1072 = vmatprep.subr.mxu0 0.0
    %1073 = vmatpush1.msra.mxu0 0.0
    %1074 = vmatprep.subr.mxu0 0.0
    %1075 = vmatpush1.msra.mxu0 0.0
    %1076 = vmatprep.subr.mxu0 0.0
    %1077 = vmatpush1.msra.mxu0 0.0
    %1078 = vmatprep.subr.mxu0 0.0
    %1079 = vmatpush1.msra.mxu0 0.0
    %1080 = vmatprep.subr.mxu0 0.0
    %1081 = vmatpush1.msra.mxu0 0.0
    %1082 = vmatprep.mubr.f32.mxu0 0.0
    %1083 = vmatmul.mubr.f32.gmra.mrb[0].mxu0 %v1016
    %v1084 = vpop.f32.mrb[0].mxu0
    %v1085 = vadd.f32 %v1013, %v1084
    %v1086 = vpop.f32.mrb[0].mxu0
    %v1087 = vadd.f32 %v1013, %v1086
    %1088 = vdwg.mxu0
    %1089 = vmatprep.subr.mxu0 %v976
    %1090 = vmatpush1.msra.mxu0 %v975
    %1091 = vmatprep.subr.mxu0 %v980
    %1092 = vmatpush1.msra.mxu0 %v979
    %1093 = vmatprep.subr.mxu0 %v984
    %1094 = vmatpush1.msra.mxu0 %v983
    %1095 = vmatprep.subr.mxu0 %v988
    %1096 = vmatpush1.msra.mxu0 %v987
    %1097 = vmatprep.subr.mxu0 %v992
    %1098 = vmatpush1.msra.mxu0 %v991
    %1099 = vmatprep.subr.mxu0 %v996
    %1100 = vmatpush1.msra.mxu0 %v995
    %1101 = vmatprep.subr.mxu0 %v1000
    %1102 = vmatpush1.msra.mxu0 %v999
    %1103 = vmatprep.subr.mxu0 %v1004
    %1104 = vmatpush1.msra.mxu0 %v1003
    %1105 = vmatprep.subr.mxu0 %v1008
    %1106 = vmatpush1.msra.mxu0 %v1007
    %1107 = vmatprep.subr.mxu0 0.0
    %1108 = vmatpush1.msra.mxu0 0.0
    %1109 = vmatprep.subr.mxu0 0.0
    %1110 = vmatpush1.msra.mxu0 0.0
    %1111 = vmatprep.subr.mxu0 0.0
    %1112 = vmatpush1.msra.mxu0 0.0
    %1113 = vmatprep.subr.mxu0 0.0
    %1114 = vmatpush1.msra.mxu0 0.0
    %1115 = vmatprep.subr.mxu0 0.0
    %1116 = vmatpush1.msra.mxu0 0.0
    %1117 = vmatprep.subr.mxu0 0.0
    %1118 = vmatpush1.msra.mxu0 0.0
    %1119 = vmatprep.subr.mxu0 0.0
    %1120 = vmatpush1.msra.mxu0 0.0
    %1121 = vmatprep.subr.mxu0 0.0
    %1122 = vmatpush1.msra.mxu0 0.0
    %1123 = vmatprep.subr.mxu0 0.0
    %1124 = vmatpush1.msra.mxu0 0.0
    %1125 = vmatprep.subr.mxu0 0.0
    %1126 = vmatpush1.msra.mxu0 0.0
    %1127 = vmatprep.subr.mxu0 0.0
    %1128 = vmatpush1.msra.mxu0 0.0
    %1129 = vmatprep.subr.mxu0 0.0
    %1130 = vmatpush1.msra.mxu0 0.0
    %1131 = vmatprep.subr.mxu0 0.0
    %1132 = vmatpush1.msra.mxu0 0.0
    %1133 = vmatprep.subr.mxu0 0.0
    %1134 = vmatpush1.msra.mxu0 0.0
    %1135 = vmatprep.subr.mxu0 0.0
    %1136 = vmatpush1.msra.mxu0 0.0
    %1137 = vmatprep.subr.mxu0 0.0
    %1138 = vmatpush1.msra.mxu0 0.0
    %1139 = vmatprep.subr.mxu0 0.0
    %1140 = vmatpush1.msra.mxu0 0.0
    %1141 = vmatprep.subr.mxu0 0.0
    %1142 = vmatpush1.msra.mxu0 0.0
    %1143 = vmatprep.subr.mxu0 0.0
    %1144 = vmatpush1.msra.mxu0 0.0
    %1145 = vmatprep.subr.mxu0 0.0
    %1146 = vmatpush1.msra.mxu0 0.0
    %1147 = vmatprep.subr.mxu0 0.0
    %1148 = vmatpush1.msra.mxu0 0.0
    %1149 = vmatprep.subr.mxu0 0.0
    %1150 = vmatpush1.msra.mxu0 0.0
    %1151 = vmatprep.subr.mxu0 0.0
    %1152 = vmatpush1.msra.mxu0 0.0
    %1153 = vmatprep.mubr.f32.mxu0 0.0
    %1154 = vmatmul.mubr.f32.gmra.mrb[0].mxu0 %v1016
    %v1155 = vpop.f32.mrb[0].mxu0
    %v1156 = vadd.f32 %v1013, %v1155
    %v1157 = vpop.f32.mrb[0].mxu0
    %v1158 = vadd.f32 %v1013, %v1157
    %1159 = vdwg.mxu0
    %vm1160 = vcmp.gt.f32.partialorder %v1085, 0.0
    %vm1161 = vcmp.gt.f32.partialorder %v1087, 0.0
    %vm1162 = vcmp.gt.f32.partialorder %v1156, 0.0
    %vm1163 = vcmp.gt.f32.partialorder %v1158, 0.0
    %v1164 = vmul.f32 %v1085, 0.01
    %v1165 = vmul.f32 %v1087, 0.01
    %v1166 = vmul.f32 %v1156, 0.01
    %v1167 = vmul.f32 %v1158, 0.01
    %v1168 = vsel %vm1160, %v1085, %v1164
    %v1169 = vsel %vm1161, %v1087, %v1165
    %v1170 = vsel %vm1162, %v1156, %v1166
    %v1171 = vsel %vm1163, %v1158, %v1167
    %1172 = vst [vmem:[#allocation9] sm:$0xff] %v1168
    %1173 = vst [vmem:[#allocation9 + $0x8] sm:$0xff] %v1169
    %s1174 = scalar_lea.vmem [#allocation9], 16
    %1175 = vst [vmem:[%s1174] sm:$0xff] %v1170
    %1176 = vst [vmem:[%s1174 + $0x8] sm:$0xff] %v1171
    // Predicated region
    $region30: #{tpu_custom_call.1} parent=1 // pred_check
      _
    $region31: #{tpu_custom_call.1} parent=1 // pred_check_branch
      %1178 = sbr.rel (0) target = $region33
    $region32: #{tpu_custom_call.1} parent=1 // pred_region
      %s1180 = ssub.s32 512, 512
      %1181 = vsyncadd [#allocation8], %s1180
      %s1182 = sshll.u32 [#allocation9], 4
      %s1183 = int_to_ptr.vmem [resolvable:$true] %s1182
      %1188 = dma.vmem_to_hbm [thread:$0]  %s1183, 512, %s5, [#allocation8], 256, 256, 16
    $region33: #{tpu_custom_call.1} parent=1 // pred_fallthru
      _
    // Predicated region
    $region34: #{tpu_custom_call.1} parent=1 // pred_check
      _
    $region35: #{tpu_custom_call.1} parent=1 // pred_check_branch
      %1190 = sbr.rel (0) target = $region37
    $region36: #{tpu_custom_call.1} parent=1 // pred_region
      %1191 = dma.done [#allocation8], 512
    $region37: #{tpu_custom_call.1} parent=1 // pred_fallthru
      _
    %1192 = vsyncpa [#allocation7], 1
    %1193 = vsyncpa [#allocation8], 1

</llo_original>
